<compile_context>
chip_gen: v7x
topology: tpu7x:2x2x1
jax: 0.10.0
libtpu: 0.0.40
codegen_flags: <defaults>
</compile_context>

<pallas_src>
import functools
import numpy as np
import jax
import jax.numpy as jnp
from jax.experimental import pallas as pl
from jax.experimental.pallas import tpu as pltpu

F32 = jnp.float32
MA_K = 25                 # series_decomp kernel size
MA_P = (MA_K - 1) // 2    # replicate pad on each side


# ----------------------------------------------------------------------------
# small helpers usable inside Pallas kernels
# ----------------------------------------------------------------------------
def _gelu(x):
    # exact GELU: erf via Abramowitz-Stegun 7.1.26 (|err| < 1.5e-7), only exp
    # TODO(synk): if jax.lax.erf gains a guaranteed Mosaic lowering, switch to it.
    z = x * 0.7071067811865476
    s = jnp.where(z >= 0.0, 1.0, -1.0)
    a = jnp.abs(z)
    t = 1.0 / (1.0 + 0.3275911 * a)
    poly = t * (0.254829592 + t * (-0.284496736 + t * (1.421413741
               + t * (-1.453152027 + t * 1.061405429))))
    erf = s * (1.0 - poly * jnp.exp(-a * a))
    return 0.5 * x * (1.0 + erf)


def _mlp2(x, w1, b1, w2, b2):
    h = _gelu(jnp.dot(x, w1, preferred_element_type=jnp.float32) + b1)
    return jnp.dot(h, w2, preferred_element_type=jnp.float32) + b2


def _layernorm(x, g, b):
    mu = jnp.mean(x, axis=-1, keepdims=True)
    var = jnp.mean((x - mu) ** 2, axis=-1, keepdims=True)
    return (x - mu) * jax.lax.rsqrt(var + 1e-5) * g + b


def _full_spec(shape):
    nd = len(shape)
    return pl.BlockSpec(tuple(shape), lambda b: (0,) * nd)


def _batch_spec(shape):
    nd = len(shape)
    return pl.BlockSpec((None,) + tuple(shape[1:]), lambda b: (b,) + (0,) * (nd - 1))


def positional_embedding(T, d_model):
    position = np.arange(T)[:, None].astype(np.float32)
    div_term = np.exp(np.arange(0, d_model, 2).astype(np.float32)
                      * -(np.log(10000.0) / d_model))
    pe = np.zeros((T, d_model), np.float32)
    pe[:, 0::2] = np.sin(position * div_term)
    pe[:, 1::2] = np.cos(position * div_term)
    return jnp.asarray(pe)


# ----------------------------------------------------------------------------
# K1: RevIN norm + embedding + series_decomp + Linear1/Linear2
# ----------------------------------------------------------------------------
def _stage1_kernel(x_ref, mark_ref, pe_ref, rw_ref, rb_ref, tokw_ref, tfw_ref,
                   w11, b11, w12, b12, w21, b21, w22, b22,
                   enc_ref, mean_ref, std_ref, circ_ref, ma_ref):
    T, N = x_ref.shape
    D = pe_ref.shape[1]
    x = x_ref[...]
    mu = jnp.mean(x, axis=0, keepdims=True)
    var = jnp.mean((x - mu) ** 2, axis=0, keepdims=True)
    std = jnp.sqrt(var + 1e-5)
    mean_ref[...] = mu
    std_ref[...] = std
    xn = ((x - mu) / std) * rw_ref[...] + rb_ref[...]

    # TokenEmbedding: circular Conv1d(N -> D, k=3, no bias)
    circ_ref[0:1, :] = xn[T - 1:T, :]
    circ_ref[1:T + 1, :] = xn
    circ_ref[T + 1:T + 2, :] = xn[0:1, :]
    cp = circ_ref[...]
    tok = jnp.zeros((T, D), F32)
    for dk in range(3):
        tok = tok + jnp.dot(cp[dk:dk + T, :], tokw_ref[dk],
                            preferred_element_type=jnp.float32)
    tf = jnp.dot(mark_ref[...], tfw_ref[...], preferred_element_type=jnp.float32)
    emb = tok + tf + pe_ref[...]

    # series_decomp (moving average k=25, replicate pad) fused in-kernel
    ma_ref[0:MA_P, :] = jnp.broadcast_to(emb[0:1, :], (MA_P, D))
    ma_ref[MA_P:MA_P + T, :] = emb
    ma_ref[MA_P + T:2 * MA_P + T, :] = jnp.broadcast_to(emb[T - 1:T, :], (MA_P, D))
    mp = ma_ref[...]
    acc = jnp.zeros((T, D), F32)
    for kk in range(MA_K):
        acc = acc + mp[kk:kk + T, :]
    trend = acc * (1.0 / MA_K)
    seasonal = emb - trend

    s_out = _mlp2(seasonal, w11[...], b11[...], w12[...], b12[...])
    t_out = _mlp2(trend, w21[...], b21[...], w22[...], b22[...])
    enc_ref[...] = s_out + t_out + emb


@jax.jit
def stage1(sp, x_enc, x_mark):
    B, T, N = x_enc.shape
    emb = sp["emb"]
    D = emb["token_w"].shape[0]
    pe = positional_embedding(T, D)
    tokw = jnp.transpose(emb["token_w"], (2, 1, 0))          # (3, N, D)
    args = [x_enc.astype(F32), x_mark.astype(F32), pe,
            sp["revin_w"].reshape(1, N), sp["revin_b"].reshape(1, N),
            tokw, emb["timef_w"],
            sp["lin1"]["w1"], sp["lin1"]["b1"].reshape(1, -1),
            sp["lin1"]["w2"], sp["lin1"]["b2"].reshape(1, -1),
            sp["lin2"]["w1"], sp["lin2"]["b1"].reshape(1, -1),
            sp["lin2"]["w2"], sp["lin2"]["b2"].reshape(1, -1)]
    in_specs = [_batch_spec(a.shape) if i < 2 else _full_spec(a.shape)
                for i, a in enumerate(args)]
    out_shapes = (jax.ShapeDtypeStruct((B, T, D), F32),
                  jax.ShapeDtypeStruct((B, 1, N), F32),
                  jax.ShapeDtypeStruct((B, 1, N), F32))
    out_specs = (_batch_spec((B, T, D)), _batch_spec((B, 1, N)), _batch_spec((B, 1, N)))
    return pl.pallas_call(
        _stage1_kernel, grid=(B,),
        out_shape=out_shapes, in_specs=in_specs, out_specs=out_specs,
        scratch_shapes=[pltpu.VMEM((T + 2, N), F32),
                        pltpu.VMEM((T + 2 * MA_P, D), F32)],
        compiler_params=pltpu.CompilerParams(dimension_semantics=("parallel",)),
    )(*args)


# ----------------------------------------------------------------------------
# K2: full GraphBlock (adj, start conv, mixprop, 1x1 mix, end conv, linear, LN)
# ----------------------------------------------------------------------------
def _graph_block_kernel(x_ref, nv1_ref, nv2_ref, sw_ref, sb_ref, mixw_ref, mixb_ref,
                        ew_ref, eb_ref, lw_ref, lb_ref, g_ref, bn_ref, o_ref,
                        *, c_out, gdep, alpha, conv_ch):
    T, D = x_ref.shape
    Kh = sw_ref.shape[0]
    skip = mixw_ref.shape[1]

    # adaptive adjacency: softmax(relu(nv1 @ nv2), dim=1), + I, row-normalize
    adp = jnp.dot(nv1_ref[...], nv2_ref[...], preferred_element_type=jnp.float32)
    adp = jnp.maximum(adp, 0.0)
    adp = adp - jnp.max(adp, axis=1, keepdims=True)
    ea = jnp.exp(adp)
    adp = ea / jnp.sum(ea, axis=1, keepdims=True)
    r = jax.lax.broadcasted_iota(jnp.int32, (c_out, c_out), 0)
    c = jax.lax.broadcasted_iota(jnp.int32, (c_out, c_out), 1)
    a = adp + jnp.where(r == c, 1.0, 0.0)
    a = a / jnp.sum(a, axis=1, keepdims=True)

    x = x_ref[...]
    sw = sw_ref[...]
    sb = sb_ref[...]
    # start_conv: Conv2d(1, conv_ch, (Kh,1)) -> per node v: (T, conv_ch)
    S = [jnp.dot(x[:, v:v + Kh], sw, preferred_element_type=jnp.float32) + sb
         for v in range(c_out)]

    # mixprop propagation (all states kept in VMEM / registers)
    states = [S]
    H = S
    for _ in range(gdep):
        Hn = []
        for v in range(c_out):
            m = H[0] * a[v:v + 1, 0:1]
            for w in range(1, c_out):
                m = m + H[w] * a[v:v + 1, w:w + 1]
            Hn.append(alpha * S[v] + (1.0 - alpha) * m)
        H = Hn
        states.append(H)

    # 1x1 mix conv over concatenated depths + GELU
    mixw = mixw_ref[...]
    mixb = mixb_ref[...]
    outs = []
    for v in range(c_out):
        o = mixb
        for k in range(gdep + 1):
            o = o + jnp.dot(states[k][v], mixw[k * conv_ch:(k + 1) * conv_ch, :],
                            preferred_element_type=jnp.float32)
        outs.append(_gelu(o))

    # end_conv (1 x seq_len) + Linear(c_out -> d_model), accumulated via broadcasts
    eb = eb_ref[...]                              # (T, 1)
    lin = jnp.broadcast_to(lb_ref[...], (T, D))
    for v in range(c_out):
        ev = eb
        for cc in range(skip):
            ev = ev + jnp.dot(ew_ref[cc], outs[v][:, cc:cc + 1],
                              preferred_element_type=jnp.float32)
        lin = lin + ev * lw_ref[v:v + 1, :]
    o_ref[...] = _layernorm(x + lin, g_ref[...], bn_ref[...])


@functools.partial(jax.jit, static_argnames=("gcn_depth", "propalpha"))
def graph_block(gp, x, gcn_depth, propalpha):
    B, T, D = x.shape
    c_out = gp["nodevec1"].shape[0]
    conv_ch = gp["start_w"].shape[0]
    skip = gp["mix_w"].shape[0]
    swT = gp["start_w"][:, 0, :, 0].T                                  # (Kh, conv_ch)
    mixT = gp["mix_w"][:, :, 0, 0].T                                   # (3*conv_ch, skip)
    endw = jnp.transpose(gp["end_w"][:, :, 0, :], (1, 0, 2))           # (skip, T, T)
    args = [x.astype(F32), gp["nodevec1"], gp["nodevec2"], swT,
            gp["start_b"].reshape(1, conv_ch), mixT, gp["mix_b"].reshape(1, skip),
            endw, gp["end_b"].reshape(T, 1), gp["lin_w"], gp["lin_b"].reshape(1, D),
            gp["norm_g"].reshape(1, D), gp["norm_b"].reshape(1, D)]
    kernel = functools.partial(_graph_block_kernel, c_out=c_out, gdep=gcn_depth,
                               alpha=propalpha, conv_ch=conv_ch)
    in_specs = [_batch_spec(x.shape)] + [_full_spec(a.shape) for a in args[1:]]
    return pl.pallas_call(
        kernel, grid=(B,),
        out_shape=jax.ShapeDtypeStruct((B, T, D), F32),
        in_specs=in_specs, out_specs=_batch_spec((B, T, D)),
        compiler_params=pltpu.CompilerParams(dimension_semantics=("parallel",)),
    )(*args)


# ----------------------------------------------------------------------------
# K3: Inception1 + GELU + Inception2 + residual + LayerNorm for one scale branch
#     (2D conv done in-kernel on the flat time axis, zero pad via VMEM scratch)
# ----------------------------------------------------------------------------
def _make_branch_kernel(T, H, W, kernel_sizes, num_k, pad_amt, p_max):
    HW = H * W

    def conv_stack(pad_ref, out_dim, wb_pairs, mask_ref):
        acc = jnp.zeros((HW, out_dim), F32)
        for (w_ref, b_ref), kk in zip(wb_pairs, kernel_sizes):
            p = kk // 2
            conv = jnp.broadcast_to(b_ref[...], (HW, out_dim))
            tap = 0
            for di in range(-p, p + 1):
                for dj in range(-p, p + 1):
                    start = pad_amt + di * W + dj
                    xs = pad_ref[start:start + HW, :]
                    if dj != 0:
                        xs = xs * mask_ref[:, dj + p_max:dj + p_max + 1]
                    conv = conv + jnp.dot(xs, w_ref[tap],
                                          preferred_element_type=jnp.float32)
                    tap += 1
            acc = acc + conv
        return acc * (1.0 / num_k)

    def kernel(x_ref, mask_ref, *rest):
        inc1 = [(rest[2 * i], rest[2 * i + 1]) for i in range(num_k)]
        off = 2 * num_k
        inc2 = [(rest[off + 2 * i], rest[off + 2 * i + 1]) for i in range(num_k)]
        off += 2 * num_k
        g_ref, bn_ref, o_ref, pad1, pad2 = (rest[off], rest[off + 1], rest[off + 2],
                                            rest[off + 3], rest[off + 4])
        N = x_ref.shape[1]
        dff = inc1[0][0].shape[2]

        pad1[...] = jnp.zeros(pad1.shape, F32)
        pad1[pad_amt:pad_amt + T, :] = x_ref[...]          # zero time-pad for t >= T
        h = _gelu(conv_stack(pad1, dff, inc1, mask_ref))

        pad2[...] = jnp.zeros(pad2.shape, F32)
        pad2[pad_amt:pad_amt + HW, :] = h
        y = conv_stack(pad2, N, inc2, mask_ref) + pad1[pad_amt:pad_amt + HW, :]
        y = _layernorm(y, g_ref[...], bn_ref[...])
        o_ref[...] = y[:T, :]

    return kernel


@functools.partial(jax.jit, static_argnames=("scale",))
def inception_branch(bp, x, scale):
    B, T, N = x.shape
    num_k = len(bp["incep1"])
    kernel_sizes = tuple(2 * i + 1 for i in range(num_k))
    p_max = num_k - 1
    H = -(-T // scale)
    W = scale
    HW = H * W
    pad_amt = p_max * (W + 1)

    mask = np.zeros((HW, 2 * p_max + 1), np.float32)
    for t in range(HW):
        for dj in range(-p_max, p_max + 1):
            mask[t, dj + p_max] = 1.0 if 0 <= (t % W) + dj < W else 0.0
    mask = jnp.asarray(mask)

    dff = bp["incep1"][0][0].shape[0]
    args = [x.astype(F32), mask]
    for (w, b) in bp["incep1"]:
        kk = w.shape[2]
        args.append(jnp.transpose(w, (2, 3, 1, 0)).reshape(kk * kk, N, dff))
        args.append(b.reshape(1, dff))
    for (w, b) in bp["incep2"]:
        kk = w.shape[2]
        args.append(jnp.transpose(w, (2, 3, 1, 0)).reshape(kk * kk, dff, N))
        args.append(b.reshape(1, N))
    args.append(bp["norm_g"].reshape(1, N))
    args.append(bp["norm_b"].reshape(1, N))

    kernel = _make_branch_kernel(T, H, W, kernel_sizes, num_k, pad_amt, p_max)
    in_specs = [_batch_spec(x.shape)] + [_full_spec(a.shape) for a in args[1:]]
    return pl.pallas_call(
        kernel, grid=(B,),
        out_shape=jax.ShapeDtypeStruct((B, T, N), F32),
        in_specs=in_specs, out_specs=_batch_spec((B, T, N)),
        scratch_shapes=[pltpu.VMEM((HW + 2 * pad_amt, N), F32),
                        pltpu.VMEM((HW + 2 * pad_amt, dff), F32)],
        compiler_params=pltpu.CompilerParams(dimension_semantics=("parallel",)),
    )(*args)


# ----------------------------------------------------------------------------
# K4: scale-weight softmax combine + residual + model LayerNorm
# ----------------------------------------------------------------------------
def _make_combine_kernel(k):
    def kernel(*refs):
        brs = refs[:k]
        x_ref, w_ref, g_ref, bn_ref, o_ref = refs[k:k + 5]
        w = w_ref[...]
        w = w - jnp.max(w, axis=1, keepdims=True)
        ew = jnp.exp(w)
        w = ew / jnp.sum(ew, axis=1, keepdims=True)
        acc = x_ref[...]
        for i in range(k):
            acc = acc + brs[i][...] * w[0:1, i:i + 1]
        o_ref[...] = _layernorm(acc, g_ref[...], bn_ref[...])
    return kernel


@jax.jit
def combine(branches, x_last, weight, ln_g, ln_b):
    B, T, D = x_last.shape
    k = len(branches)
    w3 = weight.reshape(weight.shape[0], 1, weight.shape[1]).astype(F32)
    args = [b.astype(F32) for b in branches] + [x_last.astype(F32), w3,
                                                ln_g.reshape(1, D), ln_b.reshape(1, D)]
    in_specs = ([_batch_spec((B, T, D))] * (k + 1)
                + [_batch_spec(w3.shape), _full_spec((1, D)), _full_spec((1, D))])
    return pl.pallas_call(
        _make_combine_kernel(k), grid=(B,),
        out_shape=jax.ShapeDtypeStruct((B, T, D), F32),
        in_specs=in_specs, out_specs=_batch_spec((B, T, D)),
        compiler_params=pltpu.CompilerParams(dimension_semantics=("parallel",)),
    )(*args)


# ----------------------------------------------------------------------------
# K5: projection + seq2pred + series_decomp + Linear3/4 + RevIN denorm
# ----------------------------------------------------------------------------
def _head_kernel(enc_ref, mean_ref, std_ref, pw, pb, s2pw, s2pb,
                 w31, b31, w32, b32, w41, b41, w42, b42, rw, rb,
                 o_ref, ma_ref):
    C = pw.shape[1]
    P = s2pw.shape[0]
    e = enc_ref[...]
    d0 = jnp.dot(e, pw[...], preferred_element_type=jnp.float32) + pb[...]   # (T, C)
    dec = jnp.dot(s2pw[...], d0, preferred_element_type=jnp.float32) + s2pb[...]  # (P, C)

    ma_ref[0:MA_P, :] = jnp.broadcast_to(dec[0:1, :], (MA_P, C))
    ma_ref[MA_P:MA_P + P, :] = dec
    ma_ref[MA_P + P:2 * MA_P + P, :] = jnp.broadcast_to(dec[P - 1:P, :], (MA_P, C))
    mp = ma_ref[...]
    acc = jnp.zeros((P, C), F32)
    for kk in range(MA_K):
        acc = acc + mp[kk:kk + P, :]
    mmean = acc * (1.0 / MA_K)
    res = dec - mmean                 # decom -> (res, moving_mean); Linear3 on res

    dtr = _mlp2(res, w31[...], b31[...], w32[...], b32[...])
    dse = _mlp2(mmean, w41[...], b41[...], w42[...], b42[...])
    d = dec + 0.01 * (dtr + dse)
    d = (d - rb[...]) / (rw[...] + 1e-5 * 1e-5)
    o_ref[...] = d * std_ref[...] + mean_ref[...]


@jax.jit
def head(hp, enc_out, r_mean, r_std):
    B, T, D = enc_out.shape
    C = hp["proj_w"].shape[1]
    P = hp["s2p_w"].shape[1]
    dff = hp["lin3"]["w1"].shape[1]
    args = [enc_out.astype(F32), r_mean.astype(F32), r_std.astype(F32),
            hp["proj_w"], hp["proj_b"].reshape(1, C),
            hp["s2p_w"].T, hp["s2p_b"].reshape(P, 1),
            hp["lin3"]["w1"], hp["lin3"]["b1"].reshape(1, dff),
            hp["lin3"]["w2"], hp["lin3"]["b2"].reshape(1, C),
            hp["lin4"]["w1"], hp["lin4"]["b1"].reshape(1, dff),
            hp["lin4"]["w2"], hp["lin4"]["b2"].reshape(1, C),
            hp["revin_w"].reshape(1, C), hp["revin_b"].reshape(1, C)]
    in_specs = ([_batch_spec(enc_out.shape), _batch_spec(r_mean.shape),
                 _batch_spec(r_std.shape)]
                + [_full_spec(a.shape) for a in args[3:]])
    return pl.pallas_call(
        _head_kernel, grid=(B,),
        out_shape=jax.ShapeDtypeStruct((B, P, C), F32),
        in_specs=in_specs, out_specs=_batch_spec((B, P, C)),
        scratch_shapes=[pltpu.VMEM((P + 2 * MA_P, C), F32)],
        compiler_params=pltpu.CompilerParams(dimension_semantics=("parallel",)),
    )(*args)


# ----------------------------------------------------------------------------
# FFT_for_Period (periods must be static Python ints -> one host sync / layer)
# ----------------------------------------------------------------------------
@jax.jit
def _fft_amplitude(x):
    xf = jnp.fft.rfft(x, axis=1)
    amp = jnp.abs(xf).mean(axis=0).mean(axis=-1)
    return amp.at[0].set(0.0)


def fft_for_period_host(x, k):
    # TODO(synk): rfft/top-k have no Pallas equivalent and the resulting periods
    # set static reshape shapes, so one small device->host sync per layer remains.
    amp = np.asarray(jax.device_get(_fft_amplitude(x)))
    order = [int(i) for i in np.argsort(-amp) if i != 0][:k]
    return [int(x.shape[1] // i) for i in order]


# ----------------------------------------------------------------------------
# Full model forward
# ----------------------------------------------------------------------------
def model_forward(params, cfg, x_enc, x_mark_enc, x_dec, x_mark_dec):
    del x_dec, x_mark_dec     # unused by the reference forward
    k = cfg["top_k"]
    sp = {"revin_w": params["revin_w"], "revin_b": params["revin_b"],
          "emb": params["emb"], "lin1": params["lin1"], "lin2": params["lin2"]}
    enc_out, r_mean, r_std = stage1(sp, x_enc, x_mark_enc)

    for lp in params["layers"]:
        periods = fft_for_period_host(enc_out, k)
        x_cur = enc_out
        branches = []
        for i in range(k):
            x_cur = graph_block(lp["gconv"][i], x_cur,
                                gcn_depth=cfg["gcn_depth"], propalpha=cfg["propalpha"])
            bp = {"incep1": lp["incep1"], "incep2": lp["incep2"],
                  "norm_g": lp["norm_g"], "norm_b": lp["norm_b"]}
            branches.append(inception_branch(bp, x_cur, scale=int(periods[i])))
        enc_out = combine(tuple(branches), x_cur, lp["weight"],
                          params["ln_g"], params["ln_b"])

    hp = {"proj_w": params["proj_w"], "proj_b": params["proj_b"],
          "s2p_w": params["s2p_w"], "s2p_b": params["s2p_b"],
          "lin3": params["lin3"], "lin4": params["lin4"],
          "revin_w": params["revin_w"], "revin_b": params["revin_b"]}
    return head(hp, enc_out, r_mean, r_std)


# ----------------------------------------------------------------------------
# Deterministic parameter init
# ----------------------------------------------------------------------------
class KeyGen:
    def __init__(self, seed=0):
        self.key = jax.random.PRNGKey(seed)

    def __call__(self):
        self.key, sub = jax.random.split(self.key)
        return sub


def init_params(cfg, kg):
    def nrm(shape, s=0.1):
        return (s * jax.random.normal(kg(), shape)).astype(F32)

    def zeros(*shape):
        return jnp.zeros(shape, F32)

    d_model, d_ff = cfg["d_model"], cfg["d_ff"]
    enc_in, c_out = cfg["enc_in"], cfg["c_out"]
    seq_len, pred_len = cfg["seq_len"], cfg["pred_len"]

    def init_graph_block():
        Kh = d_model - c_out + 1
        return {
            "nodevec1": nrm((c_out, cfg["node_dim"]), 1.0),
            "nodevec2": nrm((cfg["node_dim"], c_out), 1.0),
            "start_w": nrm((cfg["conv_channel"], 1, Kh, 1)),
            "start_b": zeros(cfg["conv_channel"]),
            "mix_w": nrm((cfg["skip_channel"],
                          (cfg["gcn_depth"] + 1) * cfg["conv_channel"], 1, 1)),
            "mix_b": zeros(cfg["skip_channel"]),
            "end_w": nrm((seq_len, cfg["skip_channel"], 1, seq_len)),
            "end_b": zeros(seq_len),
            "lin_w": nrm((c_out, d_model)),
            "lin_b": zeros(d_model),
            "norm_g": jnp.ones((d_model,), F32),
            "norm_b": zeros(d_model),
        }

    def init_scale_block():
        return {
            "norm_g": jnp.ones((d_model,), F32),
            "norm_b": zeros(d_model),
            "weight": nrm((cfg["batch_size"], cfg["top_k"]), 1.0),
            "incep1": [(nrm((d_ff, d_model, 2 * i + 1, 2 * i + 1)), zeros(d_ff))
                       for i in range(cfg["num_kernels"])],
            "incep2": [(nrm((d_model, d_ff, 2 * i + 1, 2 * i + 1)), zeros(d_model))
                       for i in range(cfg["num_kernels"])],
            "gconv": [init_graph_block() for _ in range(cfg["top_k"])],
        }

    return {
        "revin_w": jnp.ones((enc_in,), F32),
        "revin_b": zeros(enc_in),
        "emb": {"token_w": nrm((d_model, enc_in, 3)),
                "timef_w": nrm((cfg["mark_dim"], d_model))},
        "lin1": {"w1": nrm((d_model, d_ff)), "b1": zeros(d_ff),
                 "w2": nrm((d_ff, d_model)), "b2": zeros(d_model)},
        "lin2": {"w1": nrm((d_model, d_ff)), "b1": zeros(d_ff),
                 "w2": nrm((d_ff, d_model)), "b2": zeros(d_model)},
        "lin3": {"w1": nrm((enc_in, d_ff)), "b1": zeros(d_ff),
                 "w2": nrm((d_ff, c_out)), "b2": zeros(c_out)},
        "lin4": {"w1": nrm((enc_in, d_ff)), "b1": zeros(d_ff),
                 "w2": nrm((d_ff, c_out)), "b2": zeros(c_out)},
        "ln_g": jnp.ones((d_model,), F32),
        "ln_b": zeros(d_model),
        "proj_w": nrm((d_model, c_out)),
        "proj_b": zeros(c_out),
        "s2p_w": nrm((seq_len, pred_len)),
        "s2p_b": zeros(pred_len),
        "layers": [init_scale_block() for _ in range(cfg["e_layers"])],
    }


# ----------------------------------------------------------------------------
if __name__ == "__main__":
    cfg = dict(
        task_name="long_term_forecast",
        seq_len=16, label_len=8, pred_len=8,
        enc_in=4, c_out=4,
        d_model=16, d_ff=32,
        e_layers=1, top_k=2, num_kernels=2,
        batch_size=2,
        conv_channel=8, skip_channel=8,
        gcn_depth=2, propalpha=0.05, node_dim=8,
        mark_dim=4,                # 'timeF' features for freq='h'
    )

    kg = KeyGen(0)
    params = init_params(cfg, kg)

    key = jax.random.PRNGKey(0)
    k1, k2, k3, k4 = jax.random.split(key, 4)
    B = cfg["batch_size"]
    x_enc = jax.random.normal(k1, (B, cfg["seq_len"], cfg["enc_in"]), F32)
    x_mark_enc = jax.random.normal(k2, (B, cfg["seq_len"], cfg["mark_dim"]), F32)
    x_dec = jax.random.normal(k3, (B, cfg["label_len"] + cfg["pred_len"], cfg["enc_in"]), F32)
    x_mark_dec = jax.random.normal(k4, (B, cfg["label_len"] + cfg["pred_len"], cfg["mark_dim"]), F32)

    out = model_forward(params, cfg, x_enc, x_mark_enc, x_dec, x_mark_dec)
    out = jax.block_until_ready(out)
    assert out.shape == (B, cfg["pred_len"], cfg["c_out"]), out.shape
    assert bool(jnp.all(jnp.isfinite(out)))
    print("KERNEL_OK")
</pallas_src>

<mosaic_0001>
module attributes {stable_mosaic.version = 11 : i64} {
  func.func @_stage1_kernel(%arg0: i32, %arg1: memref<1x16x4xf32, #tpu.memory_space<vmem>>, %arg2: memref<1x16x4xf32, #tpu.memory_space<vmem>>, %arg3: memref<16x16xf32, #tpu.memory_space<vmem>>, %arg4: memref<1x4xf32, #tpu.memory_space<vmem>>, %arg5: memref<1x4xf32, #tpu.memory_space<vmem>>, %arg6: memref<3x4x16xf32, #tpu.memory_space<vmem>>, %arg7: memref<4x16xf32, #tpu.memory_space<vmem>>, %arg8: memref<16x32xf32, #tpu.memory_space<vmem>>, %arg9: memref<1x32xf32, #tpu.memory_space<vmem>>, %arg10: memref<32x16xf32, #tpu.memory_space<vmem>>, %arg11: memref<1x16xf32, #tpu.memory_space<vmem>>, %arg12: memref<16x32xf32, #tpu.memory_space<vmem>>, %arg13: memref<1x32xf32, #tpu.memory_space<vmem>>, %arg14: memref<32x16xf32, #tpu.memory_space<vmem>>, %arg15: memref<1x16xf32, #tpu.memory_space<vmem>>, %arg16: memref<1x16x16xf32, #tpu.memory_space<vmem>>, %arg17: memref<1x1x4xf32, #tpu.memory_space<vmem>>, %arg18: memref<1x1x4xf32, #tpu.memory_space<vmem>>, %arg19: memref<18x4xf32, #tpu.memory_space<vmem>>, %arg20: memref<40x16xf32, #tpu.memory_space<vmem>>) attributes {dimension_semantics = [#tpu.dimension_semantics<parallel>], iteration_bounds = array<i64: 2>, scalar_prefetch = 0 : i64, scratch_operands = 2 : i64, tpu.core_type = #tpu.core_type<tc>, window_params = [{transform_indices = @transform_0, window_bounds = array<i64: 1, 16, 4>}, {transform_indices = @transform_1, window_bounds = array<i64: 1, 16, 4>}, {pipeline_mode = #tpu.pipeline_mode<synchronous>, transform_indices = @transform_2, window_bounds = array<i64: 16, 16>}, {pipeline_mode = #tpu.pipeline_mode<synchronous>, transform_indices = @transform_3, window_bounds = array<i64: 1, 4>}, {pipeline_mode = #tpu.pipeline_mode<synchronous>, transform_indices = @transform_4, window_bounds = array<i64: 1, 4>}, {pipeline_mode = #tpu.pipeline_mode<synchronous>, transform_indices = @transform_5, window_bounds = array<i64: 3, 4, 16>}, {pipeline_mode = #tpu.pipeline_mode<synchronous>, transform_indices = @transform_6, window_bounds = array<i64: 4, 16>}, {pipeline_mode = #tpu.pipeline_mode<synchronous>, transform_indices = @transform_7, window_bounds = array<i64: 16, 32>}, {pipeline_mode = #tpu.pipeline_mode<synchronous>, transform_indices = @transform_8, window_bounds = array<i64: 1, 32>}, {pipeline_mode = #tpu.pipeline_mode<synchronous>, transform_indices = @transform_9, window_bounds = array<i64: 32, 16>}, {pipeline_mode = #tpu.pipeline_mode<synchronous>, transform_indices = @transform_10, window_bounds = array<i64: 1, 16>}, {pipeline_mode = #tpu.pipeline_mode<synchronous>, transform_indices = @transform_11, window_bounds = array<i64: 16, 32>}, {pipeline_mode = #tpu.pipeline_mode<synchronous>, transform_indices = @transform_12, window_bounds = array<i64: 1, 32>}, {pipeline_mode = #tpu.pipeline_mode<synchronous>, transform_indices = @transform_13, window_bounds = array<i64: 32, 16>}, {pipeline_mode = #tpu.pipeline_mode<synchronous>, transform_indices = @transform_14, window_bounds = array<i64: 1, 16>}, {transform_indices = @transform_15, window_bounds = array<i64: 1, 16, 16>}, {transform_indices = @transform_16, window_bounds = array<i64: 1, 1, 4>}, {transform_indices = @transform_17, window_bounds = array<i64: 1, 1, 4>}]} {
    %c0 = arith.constant 0 : index
    %c0_0 = arith.constant 0 : index
    %c0_1 = arith.constant 0 : index
    %0 = vector.load %arg1[%c0, %c0_0, %c0_1] : memref<1x16x4xf32, #tpu.memory_space<vmem>>, vector<1x16x4xf32>
    %1 = vector.shape_cast %0 : vector<1x16x4xf32> to vector<16x4xf32>
    %cst = arith.constant dense<0.000000e+00> : vector<4xf32>
    %2 = vector.multi_reduction <add>, %1, %cst [0] : vector<16x4xf32> to vector<4xf32>
    %3 = vector.shape_cast %2 : vector<4xf32> to vector<1x4xf32>
    %cst_2 = arith.constant 1.600000e+01 : f32
    %4 = vector.broadcast %cst_2 : f32 to vector<1x4xf32>
    %5 = arith.divf %3, %4 : vector<1x4xf32>
    %6 = vector.broadcast %5 : vector<1x4xf32> to vector<16x4xf32>
    %7 = arith.subf %1, %6 : vector<16x4xf32>
    %8 = arith.mulf %7, %7 : vector<16x4xf32>
    %cst_3 = arith.constant dense<0.000000e+00> : vector<4xf32>
    %9 = vector.multi_reduction <add>, %8, %cst_3 [0] : vector<16x4xf32> to vector<4xf32>
    %10 = vector.shape_cast %9 : vector<4xf32> to vector<1x4xf32>
    %cst_4 = arith.constant 1.600000e+01 : f32
    %11 = vector.broadcast %cst_4 : f32 to vector<1x4xf32>
    %12 = arith.divf %10, %11 : vector<1x4xf32>
    %cst_5 = arith.constant 9.99999974E-6 : f32
    %13 = vector.broadcast %cst_5 : f32 to vector<1x4xf32>
    %14 = arith.addf %12, %13 : vector<1x4xf32>
    %15 = math.sqrt %14 : vector<1x4xf32>
    %c0_6 = arith.constant 0 : index
    %c0_7 = arith.constant 0 : index
    %c0_8 = arith.constant 0 : index
    %16 = vector.load %arg17[%c0_6, %c0_7, %c0_8] : memref<1x1x4xf32, #tpu.memory_space<vmem>>, vector<1x1x4xf32>
    %17 = vector.shape_cast %16 : vector<1x1x4xf32> to vector<1x4xf32>
    %18 = vector.shape_cast %5 : vector<1x4xf32> to vector<1x1x4xf32>
    tpu.vector_store %arg17[%c0_6, %c0_7, %c0_8], %18 {strides = array<i32>} : memref<1x1x4xf32, #tpu.memory_space<vmem>>, vector<1x1x4xf32>,
    %c0_9 = arith.constant 0 : index
    %c0_10 = arith.constant 0 : index
    %c0_11 = arith.constant 0 : index
    %19 = vector.load %arg18[%c0_9, %c0_10, %c0_11] : memref<1x1x4xf32, #tpu.memory_space<vmem>>, vector<1x1x4xf32>
    %20 = vector.shape_cast %19 : vector<1x1x4xf32> to vector<1x4xf32>
    %21 = vector.shape_cast %15 : vector<1x4xf32> to vector<1x1x4xf32>
    tpu.vector_store %arg18[%c0_9, %c0_10, %c0_11], %21 {strides = array<i32>} : memref<1x1x4xf32, #tpu.memory_space<vmem>>, vector<1x1x4xf32>,
    %22 = vector.broadcast %5 : vector<1x4xf32> to vector<16x4xf32>
    %23 = arith.subf %1, %22 : vector<16x4xf32>
    %24 = vector.broadcast %15 : vector<1x4xf32> to vector<16x4xf32>
    %25 = arith.divf %23, %24 : vector<16x4xf32>
    %c0_12 = arith.constant 0 : index
    %c0_13 = arith.constant 0 : index
    %26 = vector.load %arg4[%c0_12, %c0_13] : memref<1x4xf32, #tpu.memory_space<vmem>>, vector<1x4xf32>
    %27 = vector.broadcast %26 : vector<1x4xf32> to vector<16x4xf32>
    %28 = arith.mulf %25, %27 : vector<16x4xf32>
    %c0_14 = arith.constant 0 : index
    %c0_15 = arith.constant 0 : index
    %29 = vector.load %arg5[%c0_14, %c0_15] : memref<1x4xf32, #tpu.memory_space<vmem>>, vector<1x4xf32>
    %30 = vector.broadcast %29 : vector<1x4xf32> to vector<16x4xf32>
    %31 = arith.addf %28, %30 : vector<16x4xf32>
    %32 = vector.extract_strided_slice %31 {offsets = [15, 0], sizes = [1, 4], strides = [1, 1]} : vector<16x4xf32> to vector<1x4xf32>
    %c0_16 = arith.constant 0 : index
    %c0_17 = arith.constant 0 : index
    %33 = vector.load %arg19[%c0_16, %c0_17] : memref<18x4xf32, #tpu.memory_space<vmem>>, vector<1x4xf32>
    tpu.vector_store %arg19[%c0_16, %c0_17], %32 {strides = array<i32>} : memref<18x4xf32, #tpu.memory_space<vmem>>, vector<1x4xf32>,
    %c1 = arith.constant 1 : index
    %c0_18 = arith.constant 0 : index
    %34 = vector.load %arg19[%c1, %c0_18] : memref<18x4xf32, #tpu.memory_space<vmem>>, vector<16x4xf32>
    tpu.vector_store %arg19[%c1, %c0_18], %31 {strides = array<i32>} : memref<18x4xf32, #tpu.memory_space<vmem>>, vector<16x4xf32>,
    %35 = vector.extract_strided_slice %31 {offsets = [0, 0], sizes = [1, 4], strides = [1, 1]} : vector<16x4xf32> to vector<1x4xf32>
    %c17 = arith.constant 17 : index
    %c0_19 = arith.constant 0 : index
    %36 = vector.load %arg19[%c17, %c0_19] : memref<18x4xf32, #tpu.memory_space<vmem>>, vector<1x4xf32>
    tpu.vector_store %arg19[%c17, %c0_19], %35 {strides = array<i32>} : memref<18x4xf32, #tpu.memory_space<vmem>>, vector<1x4xf32>,
    %c0_20 = arith.constant 0 : index
    %c0_21 = arith.constant 0 : index
    %37 = vector.load %arg19[%c0_20, %c0_21] : memref<18x4xf32, #tpu.memory_space<vmem>>, vector<18x4xf32>
    %cst_22 = arith.constant 0.000000e+00 : f32
    %38 = vector.broadcast %cst_22 : f32 to vector<16x16xf32>
    %39 = vector.extract_strided_slice %37 {offsets = [0, 0], sizes = [16, 4], strides = [1, 1]} : vector<18x4xf32> to vector<16x4xf32>
    %c0_23 = arith.constant 0 : index
    %c0_24 = arith.constant 0 : index
    %c0_25 = arith.constant 0 : index
    %40 = vector.load %arg6[%c0_23, %c0_24, %c0_25] : memref<3x4x16xf32, #tpu.memory_space<vmem>>, vector<1x4x16xf32>
    %41 = vector.shape_cast %40 : vector<1x4x16xf32> to vector<4x16xf32>
    %cst_26 = arith.constant dense<0.000000e+00> : vector<16x16xf32>
    %42 = tpu.matmul %39, %41, %cst_26 {dimension_numbers = #tpu.dot_dimension_numbers<[1], [0], [0], [1], [0, 0, 1, 1], [], []>} : vector<16x4xf32>, vector<4x16xf32>, vector<16x16xf32> -> vector<16x16xf32>
    %43 = arith.addf %38, %42 : vector<16x16xf32>
    %44 = vector.extract_strided_slice %37 {offsets = [1, 0], sizes = [16, 4], strides = [1, 1]} : vector<18x4xf32> to vector<16x4xf32>
    %c1_27 = arith.constant 1 : index
    %c0_28 = arith.constant 0 : index
    %c0_29 = arith.constant 0 : index
    %45 = vector.load %arg6[%c1_27, %c0_28, %c0_29] : memref<3x4x16xf32, #tpu.memory_space<vmem>>, vector<1x4x16xf32>
    %46 = vector.shape_cast %45 : vector<1x4x16xf32> to vector<4x16xf32>
    %cst_30 = arith.constant dense<0.000000e+00> : vector<16x16xf32>
    %47 = tpu.matmul %44, %46, %cst_30 {dimension_numbers = #tpu.dot_dimension_numbers<[1], [0], [0], [1], [0, 0, 1, 1], [], []>} : vector<16x4xf32>, vector<4x16xf32>, vector<16x16xf32> -> vector<16x16xf32>
    %48 = arith.addf %43, %47 : vector<16x16xf32>
    %49 = vector.extract_strided_slice %37 {offsets = [2, 0], sizes = [16, 4], strides = [1, 1]} : vector<18x4xf32> to vector<16x4xf32>
    %c2 = arith.constant 2 : index
    %c0_31 = arith.constant 0 : index
    %c0_32 = arith.constant 0 : index
    %50 = vector.load %arg6[%c2, %c0_31, %c0_32] : memref<3x4x16xf32, #tpu.memory_space<vmem>>, vector<1x4x16xf32>
    %51 = vector.shape_cast %50 : vector<1x4x16xf32> to vector<4x16xf32>
    %cst_33 = arith.constant dense<0.000000e+00> : vector<16x16xf32>
    %52 = tpu.matmul %49, %51, %cst_33 {dimension_numbers = #tpu.dot_dimension_numbers<[1], [0], [0], [1], [0, 0, 1, 1], [], []>} : vector<16x4xf32>, vector<4x16xf32>, vector<16x16xf32> -> vector<16x16xf32>
    %53 = arith.addf %48, %52 : vector<16x16xf32>
    %c0_34 = arith.constant 0 : index
    %c0_35 = arith.constant 0 : index
    %c0_36 = arith.constant 0 : index
    %54 = vector.load %arg2[%c0_34, %c0_35, %c0_36] : memref<1x16x4xf32, #tpu.memory_space<vmem>>, vector<1x16x4xf32>
    %55 = vector.shape_cast %54 : vector<1x16x4xf32> to vector<16x4xf32>
    %c0_37 = arith.constant 0 : index
    %c0_38 = arith.constant 0 : index
    %56 = vector.load %arg7[%c0_37, %c0_38] : memref<4x16xf32, #tpu.memory_space<vmem>>, vector<4x16xf32>
    %cst_39 = arith.constant dense<0.000000e+00> : vector<16x16xf32>
    %57 = tpu.matmul %55, %56, %cst_39 {dimension_numbers = #tpu.dot_dimension_numbers<[1], [0], [0], [1], [0, 0, 1, 1], [], []>} : vector<16x4xf32>, vector<4x16xf32>, vector<16x16xf32> -> vector<16x16xf32>
    %58 = arith.addf %53, %57 : vector<16x16xf32>
    %c0_40 = arith.constant 0 : index
    %c0_41 = arith.constant 0 : index
    %59 = vector.load %arg3[%c0_40, %c0_41] : memref<16x16xf32, #tpu.memory_space<vmem>>, vector<16x16xf32>
    %60 = arith.addf %58, %59 : vector<16x16xf32>
    %61 = vector.extract_strided_slice %60 {offsets = [0, 0], sizes = [1, 16], strides = [1, 1]} : vector<16x16xf32> to vector<1x16xf32>
    %62 = vector.shape_cast %61 : vector<1x16xf32> to vector<1x16xf32>
    %63 = vector.broadcast %62 : vector<1x16xf32> to vector<12x16xf32>
    %c0_42 = arith.constant 0 : index
    %c0_43 = arith.constant 0 : index
    %64 = vector.load %arg20[%c0_42, %c0_43] : memref<40x16xf32, #tpu.memory_space<vmem>>, vector<12x16xf32>
    tpu.vector_store %arg20[%c0_42, %c0_43], %63 {strides = array<i32>} : memref<40x16xf32, #tpu.memory_space<vmem>>, vector<12x16xf32>,
    %c12 = arith.constant 12 : index
    %c0_44 = arith.constant 0 : index
    %65 = vector.load %arg20[%c12, %c0_44] : memref<40x16xf32, #tpu.memory_space<vmem>>, vector<16x16xf32>
    tpu.vector_store %arg20[%c12, %c0_44], %60 {strides = array<i32>} : memref<40x16xf32, #tpu.memory_space<vmem>>, vector<16x16xf32>,
    %66 = vector.extract_strided_slice %60 {offsets = [15, 0], sizes = [1, 16], strides = [1, 1]} : vector<16x16xf32> to vector<1x16xf32>
    %67 = vector.shape_cast %66 : vector<1x16xf32> to vector<1x16xf32>
    %68 = vector.broadcast %67 : vector<1x16xf32> to vector<12x16xf32>
    %c28 = arith.constant 28 : index
    %c0_45 = arith.constant 0 : index
    %69 = vector.load %arg20[%c28, %c0_45] : memref<40x16xf32, #tpu.memory_space<vmem>>, vector<12x16xf32>
    tpu.vector_store %arg20[%c28, %c0_45], %68 {strides = array<i32>} : memref<40x16xf32, #tpu.memory_space<vmem>>, vector<12x16xf32>,
    %c0_46 = arith.constant 0 : index
    %c0_47 = arith.constant 0 : index
    %70 = vector.load %arg20[%c0_46, %c0_47] : memref<40x16xf32, #tpu.memory_space<vmem>>, vector<40x16xf32>
    %cst_48 = arith.constant 0.000000e+00 : f32
    %71 = vector.broadcast %cst_48 : f32 to vector<16x16xf32>
    %72 = vector.extract_strided_slice %70 {offsets = [0, 0], sizes = [16, 16], strides = [1, 1]} : vector<40x16xf32> to vector<16x16xf32>
    %73 = arith.addf %71, %72 : vector<16x16xf32>
    %74 = vector.extract_strided_slice %70 {offsets = [1, 0], sizes = [16, 16], strides = [1, 1]} : vector<40x16xf32> to vector<16x16xf32>
    %75 = arith.addf %73, %74 : vector<16x16xf32>
    %76 = vector.extract_strided_slice %70 {offsets = [2, 0], sizes = [16, 16], strides = [1, 1]} : vector<40x16xf32> to vector<16x16xf32>
    %77 = arith.addf %75, %76 : vector<16x16xf32>
    %78 = vector.extract_strided_slice %70 {offsets = [3, 0], sizes = [16, 16], strides = [1, 1]} : vector<40x16xf32> to vector<16x16xf32>
    %79 = arith.addf %77, %78 : vector<16x16xf32>
    %80 = vector.extract_strided_slice %70 {offsets = [4, 0], sizes = [16, 16], strides = [1, 1]} : vector<40x16xf32> to vector<16x16xf32>
    %81 = arith.addf %79, %80 : vector<16x16xf32>
    %82 = vector.extract_strided_slice %70 {offsets = [5, 0], sizes = [16, 16], strides = [1, 1]} : vector<40x16xf32> to vector<16x16xf32>
    %83 = arith.addf %81, %82 : vector<16x16xf32>
    %84 = vector.extract_strided_slice %70 {offsets = [6, 0], sizes = [16, 16], strides = [1, 1]} : vector<40x16xf32> to vector<16x16xf32>
    %85 = arith.addf %83, %84 : vector<16x16xf32>
    %86 = vector.extract_strided_slice %70 {offsets = [7, 0], sizes = [16, 16], strides = [1, 1]} : vector<40x16xf32> to vector<16x16xf32>
    %87 = arith.addf %85, %86 : vector<16x16xf32>
    %88 = vector.extract_strided_slice %70 {offsets = [8, 0], sizes = [16, 16], strides = [1, 1]} : vector<40x16xf32> to vector<16x16xf32>
    %89 = arith.addf %87, %88 : vector<16x16xf32>
    %90 = vector.extract_strided_slice %70 {offsets = [9, 0], sizes = [16, 16], strides = [1, 1]} : vector<40x16xf32> to vector<16x16xf32>
    %91 = arith.addf %89, %90 : vector<16x16xf32>
    %92 = vector.extract_strided_slice %70 {offsets = [10, 0], sizes = [16, 16], strides = [1, 1]} : vector<40x16xf32> to vector<16x16xf32>
    %93 = arith.addf %91, %92 : vector<16x16xf32>
    %94 = vector.extract_strided_slice %70 {offsets = [11, 0], sizes = [16, 16], strides = [1, 1]} : vector<40x16xf32> to vector<16x16xf32>
    %95 = arith.addf %93, %94 : vector<16x16xf32>
    %96 = vector.extract_strided_slice %70 {offsets = [12, 0], sizes = [16, 16], strides = [1, 1]} : vector<40x16xf32> to vector<16x16xf32>
    %97 = arith.addf %95, %96 : vector<16x16xf32>
    %98 = vector.extract_strided_slice %70 {offsets = [13, 0], sizes = [16, 16], strides = [1, 1]} : vector<40x16xf32> to vector<16x16xf32>
    %99 = arith.addf %97, %98 : vector<16x16xf32>
    %100 = vector.extract_strided_slice %70 {offsets = [14, 0], sizes = [16, 16], strides = [1, 1]} : vector<40x16xf32> to vector<16x16xf32>
    %101 = arith.addf %99, %100 : vector<16x16xf32>
    %102 = vector.extract_strided_slice %70 {offsets = [15, 0], sizes = [16, 16], strides = [1, 1]} : vector<40x16xf32> to vector<16x16xf32>
    %103 = arith.addf %101, %102 : vector<16x16xf32>
    %104 = vector.extract_strided_slice %70 {offsets = [16, 0], sizes = [16, 16], strides = [1, 1]} : vector<40x16xf32> to vector<16x16xf32>
    %105 = arith.addf %103, %104 : vector<16x16xf32>
    %106 = vector.extract_strided_slice %70 {offsets = [17, 0], sizes = [16, 16], strides = [1, 1]} : vector<40x16xf32> to vector<16x16xf32>
    %107 = arith.addf %105, %106 : vector<16x16xf32>
    %108 = vector.extract_strided_slice %70 {offsets = [18, 0], sizes = [16, 16], strides = [1, 1]} : vector<40x16xf32> to vector<16x16xf32>
    %109 = arith.addf %107, %108 : vector<16x16xf32>
    %110 = vector.extract_strided_slice %70 {offsets = [19, 0], sizes = [16, 16], strides = [1, 1]} : vector<40x16xf32> to vector<16x16xf32>
    %111 = arith.addf %109, %110 : vector<16x16xf32>
    %112 = vector.extract_strided_slice %70 {offsets = [20, 0], sizes = [16, 16], strides = [1, 1]} : vector<40x16xf32> to vector<16x16xf32>
    %113 = arith.addf %111, %112 : vector<16x16xf32>
    %114 = vector.extract_strided_slice %70 {offsets = [21, 0], sizes = [16, 16], strides = [1, 1]} : vector<40x16xf32> to vector<16x16xf32>
    %115 = arith.addf %113, %114 : vector<16x16xf32>
    %116 = vector.extract_strided_slice %70 {offsets = [22, 0], sizes = [16, 16], strides = [1, 1]} : vector<40x16xf32> to vector<16x16xf32>
    %117 = arith.addf %115, %116 : vector<16x16xf32>
    %118 = vector.extract_strided_slice %70 {offsets = [23, 0], sizes = [16, 16], strides = [1, 1]} : vector<40x16xf32> to vector<16x16xf32>
    %119 = arith.addf %117, %118 : vector<16x16xf32>
    %120 = vector.extract_strided_slice %70 {offsets = [24, 0], sizes = [16, 16], strides = [1, 1]} : vector<40x16xf32> to vector<16x16xf32>
    %121 = arith.addf %119, %120 : vector<16x16xf32>
    %cst_49 = arith.constant 4.000000e-02 : f32
    %122 = vector.broadcast %cst_49 : f32 to vector<16x16xf32>
    %123 = arith.mulf %121, %122 : vector<16x16xf32>
    %124 = arith.subf %60, %123 : vector<16x16xf32>
    %c0_50 = arith.constant 0 : index
    %c0_51 = arith.constant 0 : index
    %125 = vector.load %arg8[%c0_50, %c0_51] : memref<16x32xf32, #tpu.memory_space<vmem>>, vector<16x32xf32>
    %c0_52 = arith.constant 0 : index
    %c0_53 = arith.constant 0 : index
    %126 = vector.load %arg9[%c0_52, %c0_53] : memref<1x32xf32, #tpu.memory_space<vmem>>, vector<1x32xf32>
    %c0_54 = arith.constant 0 : index
    %c0_55 = arith.constant 0 : index
    %127 = vector.load %arg10[%c0_54, %c0_55] : memref<32x16xf32, #tpu.memory_space<vmem>>, vector<32x16xf32>
    %c0_56 = arith.constant 0 : index
    %c0_57 = arith.constant 0 : index
    %128 = vector.load %arg11[%c0_56, %c0_57] : memref<1x16xf32, #tpu.memory_space<vmem>>, vector<1x16xf32>
    %cst_58 = arith.constant dense<0.000000e+00> : vector<16x32xf32>
    %129 = tpu.matmul %124, %125, %cst_58 {dimension_numbers = #tpu.dot_dimension_numbers<[1], [0], [0], [1], [0, 0, 1, 1], [], []>} : vector<16x16xf32>, vector<16x32xf32>, vector<16x32xf32> -> vector<16x32xf32>
    %130 = vector.broadcast %126 : vector<1x32xf32> to vector<16x32xf32>
    %131 = arith.addf %129, %130 : vector<16x32xf32>
    %cst_59 = arith.constant 0.707106769 : f32
    %132 = vector.broadcast %cst_59 : f32 to vector<16x32xf32>
    %133 = arith.mulf %131, %132 : vector<16x32xf32>
    %cst_60 = arith.constant 0.000000e+00 : f32
    %134 = vector.broadcast %cst_60 : f32 to vector<16x32xf32>
    %135 = arith.cmpf oge, %133, %134 : vector<16x32xf32>
    %cst_61 = arith.constant 1.000000e+00 : f32
    %cst_62 = arith.constant -1.000000e+00 : f32
    %136 = vector.broadcast %cst_61 : f32 to vector<16x32xf32>
    %137 = vector.broadcast %cst_62 : f32 to vector<16x32xf32>
    %138 = arith.select %135, %136, %137 : vector<16x32xi1>, vector<16x32xf32>
    %139 = math.absf %133 : vector<16x32xf32>
    %cst_63 = arith.constant 0.327591091 : f32
    %140 = vector.broadcast %cst_63 : f32 to vector<16x32xf32>
    %141 = arith.mulf %140, %139 : vector<16x32xf32>
    %cst_64 = arith.constant 1.000000e+00 : f32
    %142 = vector.broadcast %cst_64 : f32 to vector<16x32xf32>
    %143 = arith.addf %142, %141 : vector<16x32xf32>
    %cst_65 = arith.constant 1.000000e+00 : f32
    %144 = vector.broadcast %cst_65 : f32 to vector<16x32xf32>
    %145 = arith.divf %144, %143 : vector<16x32xf32>
    %cst_66 = arith.constant 1.06140542 : f32
    %146 = vector.broadcast %cst_66 : f32 to vector<16x32xf32>
    %147 = arith.mulf %145, %146 : vector<16x32xf32>
    %cst_67 = arith.constant -1.45315206 : f32
    %148 = vector.broadcast %cst_67 : f32 to vector<16x32xf32>
    %149 = arith.addf %148, %147 : vector<16x32xf32>
    %150 = arith.mulf %145, %149 : vector<16x32xf32>
    %cst_68 = arith.constant 1.42141378 : f32
    %151 = vector.broadcast %cst_68 : f32 to vector<16x32xf32>
    %152 = arith.addf %151, %150 : vector<16x32xf32>
    %153 = arith.mulf %145, %152 : vector<16x32xf32>
    %cst_69 = arith.constant -0.284496725 : f32
    %154 = vector.broadcast %cst_69 : f32 to vector<16x32xf32>
    %155 = arith.addf %154, %153 : vector<16x32xf32>
    %156 = arith.mulf %145, %155 : vector<16x32xf32>
    %cst_70 = arith.constant 0.254829586 : f32
    %157 = vector.broadcast %cst_70 : f32 to vector<16x32xf32>
    %158 = arith.addf %157, %156 : vector<16x32xf32>
    %159 = arith.mulf %145, %158 : vector<16x32xf32>
    %cst_71 = arith.constant 0.000000e+00 : f32
    %160 = vector.broadcast %cst_71 : f32 to vector<16x32xf32>
    %161 = arith.subf %160, %139 : vector<16x32xf32>
    %162 = arith.mulf %161, %139 : vector<16x32xf32>
    %163 = math.exp %162 : vector<16x32xf32>
    %164 = arith.mulf %159, %163 : vector<16x32xf32>
    %cst_72 = arith.constant 1.000000e+00 : f32
    %165 = vector.broadcast %cst_72 : f32 to vector<16x32xf32>
    %166 = arith.subf %165, %164 : vector<16x32xf32>
    %167 = arith.mulf %138, %166 : vector<16x32xf32>
    %cst_73 = arith.constant 5.000000e-01 : f32
    %168 = vector.broadcast %cst_73 : f32 to vector<16x32xf32>
    %169 = arith.mulf %168, %131 : vector<16x32xf32>
    %cst_74 = arith.constant 1.000000e+00 : f32
    %170 = vector.broadcast %cst_74 : f32 to vector<16x32xf32>
    %171 = arith.addf %170, %167 : vector<16x32xf32>
    %172 = arith.mulf %169, %171 : vector<16x32xf32>
    %cst_75 = arith.constant dense<0.000000e+00> : vector<16x16xf32>
    %173 = tpu.matmul %172, %127, %cst_75 {dimension_numbers = #tpu.dot_dimension_numbers<[1], [0], [0], [1], [0, 0, 1, 1], [], []>} : vector<16x32xf32>, vector<32x16xf32>, vector<16x16xf32> -> vector<16x16xf32>
    %174 = vector.broadcast %128 : vector<1x16xf32> to vector<16x16xf32>
    %175 = arith.addf %173, %174 : vector<16x16xf32>
    %c0_76 = arith.constant 0 : index
    %c0_77 = arith.constant 0 : index
    %176 = vector.load %arg12[%c0_76, %c0_77] : memref<16x32xf32, #tpu.memory_space<vmem>>, vector<16x32xf32>
    %c0_78 = arith.constant 0 : index
    %c0_79 = arith.constant 0 : index
    %177 = vector.load %arg13[%c0_78, %c0_79] : memref<1x32xf32, #tpu.memory_space<vmem>>, vector<1x32xf32>
    %c0_80 = arith.constant 0 : index
    %c0_81 = arith.constant 0 : index
    %178 = vector.load %arg14[%c0_80, %c0_81] : memref<32x16xf32, #tpu.memory_space<vmem>>, vector<32x16xf32>
    %c0_82 = arith.constant 0 : index
    %c0_83 = arith.constant 0 : index
    %179 = vector.load %arg15[%c0_82, %c0_83] : memref<1x16xf32, #tpu.memory_space<vmem>>, vector<1x16xf32>
    %cst_84 = arith.constant dense<0.000000e+00> : vector<16x32xf32>
    %180 = tpu.matmul %123, %176, %cst_84 {dimension_numbers = #tpu.dot_dimension_numbers<[1], [0], [0], [1], [0, 0, 1, 1], [], []>} : vector<16x16xf32>, vector<16x32xf32>, vector<16x32xf32> -> vector<16x32xf32>
    %181 = vector.broadcast %177 : vector<1x32xf32> to vector<16x32xf32>
    %182 = arith.addf %180, %181 : vector<16x32xf32>
    %cst_85 = arith.constant 0.707106769 : f32
    %183 = vector.broadcast %cst_85 : f32 to vector<16x32xf32>
    %184 = arith.mulf %182, %183 : vector<16x32xf32>
    %cst_86 = arith.constant 0.000000e+00 : f32
    %185 = vector.broadcast %cst_86 : f32 to vector<16x32xf32>
    %186 = arith.cmpf oge, %184, %185 : vector<16x32xf32>
    %cst_87 = arith.constant 1.000000e+00 : f32
    %cst_88 = arith.constant -1.000000e+00 : f32
    %187 = vector.broadcast %cst_87 : f32 to vector<16x32xf32>
    %188 = vector.broadcast %cst_88 : f32 to vector<16x32xf32>
    %189 = arith.select %186, %187, %188 : vector<16x32xi1>, vector<16x32xf32>
    %190 = math.absf %184 : vector<16x32xf32>
    %cst_89 = arith.constant 0.327591091 : f32
    %191 = vector.broadcast %cst_89 : f32 to vector<16x32xf32>
    %192 = arith.mulf %191, %190 : vector<16x32xf32>
    %cst_90 = arith.constant 1.000000e+00 : f32
    %193 = vector.broadcast %cst_90 : f32 to vector<16x32xf32>
    %194 = arith.addf %193, %192 : vector<16x32xf32>
    %cst_91 = arith.constant 1.000000e+00 : f32
    %195 = vector.broadcast %cst_91 : f32 to vector<16x32xf32>
    %196 = arith.divf %195, %194 : vector<16x32xf32>
    %cst_92 = arith.constant 1.06140542 : f32
    %197 = vector.broadcast %cst_92 : f32 to vector<16x32xf32>
    %198 = arith.mulf %196, %197 : vector<16x32xf32>
    %cst_93 = arith.constant -1.45315206 : f32
    %199 = vector.broadcast %cst_93 : f32 to vector<16x32xf32>
    %200 = arith.addf %199, %198 : vector<16x32xf32>
    %201 = arith.mulf %196, %200 : vector<16x32xf32>
    %cst_94 = arith.constant 1.42141378 : f32
    %202 = vector.broadcast %cst_94 : f32 to vector<16x32xf32>
    %203 = arith.addf %202, %201 : vector<16x32xf32>
    %204 = arith.mulf %196, %203 : vector<16x32xf32>
    %cst_95 = arith.constant -0.284496725 : f32
    %205 = vector.broadcast %cst_95 : f32 to vector<16x32xf32>
    %206 = arith.addf %205, %204 : vector<16x32xf32>
    %207 = arith.mulf %196, %206 : vector<16x32xf32>
    %cst_96 = arith.constant 0.254829586 : f32
    %208 = vector.broadcast %cst_96 : f32 to vector<16x32xf32>
    %209 = arith.addf %208, %207 : vector<16x32xf32>
    %210 = arith.mulf %196, %209 : vector<16x32xf32>
    %cst_97 = arith.constant 0.000000e+00 : f32
    %211 = vector.broadcast %cst_97 : f32 to vector<16x32xf32>
    %212 = arith.subf %211, %190 : vector<16x32xf32>
    %213 = arith.mulf %212, %190 : vector<16x32xf32>
    %214 = math.exp %213 : vector<16x32xf32>
    %215 = arith.mulf %210, %214 : vector<16x32xf32>
    %cst_98 = arith.constant 1.000000e+00 : f32
    %216 = vector.broadcast %cst_98 : f32 to vector<16x32xf32>
    %217 = arith.subf %216, %215 : vector<16x32xf32>
    %218 = arith.mulf %189, %217 : vector<16x32xf32>
    %cst_99 = arith.constant 5.000000e-01 : f32
    %219 = vector.broadcast %cst_99 : f32 to vector<16x32xf32>
    %220 = arith.mulf %219, %182 : vector<16x32xf32>
    %cst_100 = arith.constant 1.000000e+00 : f32
    %221 = vector.broadcast %cst_100 : f32 to vector<16x32xf32>
    %222 = arith.addf %221, %218 : vector<16x32xf32>
    %223 = arith.mulf %220, %222 : vector<16x32xf32>
    %cst_101 = arith.constant dense<0.000000e+00> : vector<16x16xf32>
    %224 = tpu.matmul %223, %178, %cst_101 {dimension_numbers = #tpu.dot_dimension_numbers<[1], [0], [0], [1], [0, 0, 1, 1], [], []>} : vector<16x32xf32>, vector<32x16xf32>, vector<16x16xf32> -> vector<16x16xf32>
    %225 = vector.broadcast %179 : vector<1x16xf32> to vector<16x16xf32>
    %226 = arith.addf %224, %225 : vector<16x16xf32>
    %227 = arith.addf %175, %226 : vector<16x16xf32>
    %228 = arith.addf %227, %60 : vector<16x16xf32>
    %c0_102 = arith.constant 0 : index
    %c0_103 = arith.constant 0 : index
    %c0_104 = arith.constant 0 : index
    %229 = vector.load %arg16[%c0_102, %c0_103, %c0_104] : memref<1x16x16xf32, #tpu.memory_space<vmem>>, vector<1x16x16xf32>
    %230 = vector.shape_cast %229 : vector<1x16x16xf32> to vector<16x16xf32>
    %231 = vector.shape_cast %228 : vector<16x16xf32> to vector<1x16x16xf32>
    tpu.vector_store %arg16[%c0_102, %c0_103, %c0_104], %231 {strides = array<i32>} : memref<1x16x16xf32, #tpu.memory_space<vmem>>, vector<1x16x16xf32>,
    return
  }
  func.func @transform_0(%arg0: i32) -> (i32, i32, i32) {
    %c0_i32 = arith.constant 0 : i32
    %c0_i32_0 = arith.constant 0 : i32
    %c0_i32_1 = arith.constant 0 : i32
    return %arg0, %c0_i32, %c0_i32_0 : i32, i32, i32
  }
  func.func @transform_1(%arg0: i32) -> (i32, i32, i32) {
    %c0_i32 = arith.constant 0 : i32
    %c0_i32_0 = arith.constant 0 : i32
    %c0_i32_1 = arith.constant 0 : i32
    return %arg0, %c0_i32, %c0_i32_0 : i32, i32, i32
  }
  func.func @transform_2(%arg0: i32) -> (i32, i32) {
    %c0_i32 = arith.constant 0 : i32
    %c0_i32_0 = arith.constant 0 : i32
    %c0_i32_1 = arith.constant 0 : i32
    return %c0_i32, %c0_i32_0 : i32, i32
  }
  func.func @transform_3(%arg0: i32) -> (i32, i32) {
    %c0_i32 = arith.constant 0 : i32
    %c0_i32_0 = arith.constant 0 : i32
    %c0_i32_1 = arith.constant 0 : i32
    return %c0_i32, %c0_i32_0 : i32, i32
  }
  func.func @transform_4(%arg0: i32) -> (i32, i32) {
    %c0_i32 = arith.constant 0 : i32
    %c0_i32_0 = arith.constant 0 : i32
    %c0_i32_1 = arith.constant 0 : i32
    return %c0_i32, %c0_i32_0 : i32, i32
  }
  func.func @transform_5(%arg0: i32) -> (i32, i32, i32) {
    %c0_i32 = arith.constant 0 : i32
    %c0_i32_0 = arith.constant 0 : i32
    %c0_i32_1 = arith.constant 0 : i32
    %c0_i32_2 = arith.constant 0 : i32
    return %c0_i32, %c0_i32_0, %c0_i32_1 : i32, i32, i32
  }
  func.func @transform_6(%arg0: i32) -> (i32, i32) {
    %c0_i32 = arith.constant 0 : i32
    %c0_i32_0 = arith.constant 0 : i32
    %c0_i32_1 = arith.constant 0 : i32
    return %c0_i32, %c0_i32_0 : i32, i32
  }
  func.func @transform_7(%arg0: i32) -> (i32, i32) {
    %c0_i32 = arith.constant 0 : i32
    %c0_i32_0 = arith.constant 0 : i32
    %c0_i32_1 = arith.constant 0 : i32
    return %c0_i32, %c0_i32_0 : i32, i32
  }
  func.func @transform_8(%arg0: i32) -> (i32, i32) {
    %c0_i32 = arith.constant 0 : i32
    %c0_i32_0 = arith.constant 0 : i32
    %c0_i32_1 = arith.constant 0 : i32
    return %c0_i32, %c0_i32_0 : i32, i32
  }
  func.func @transform_9(%arg0: i32) -> (i32, i32) {
    %c0_i32 = arith.constant 0 : i32
    %c0_i32_0 = arith.constant 0 : i32
    %c0_i32_1 = arith.constant 0 : i32
    return %c0_i32, %c0_i32_0 : i32, i32
  }
  func.func @transform_10(%arg0: i32) -> (i32, i32) {
    %c0_i32 = arith.constant 0 : i32
    %c0_i32_0 = arith.constant 0 : i32
    %c0_i32_1 = arith.constant 0 : i32
    return %c0_i32, %c0_i32_0 : i32, i32
  }
  func.func @transform_11(%arg0: i32) -> (i32, i32) {
    %c0_i32 = arith.constant 0 : i32
    %c0_i32_0 = arith.constant 0 : i32
    %c0_i32_1 = arith.constant 0 : i32
    return %c0_i32, %c0_i32_0 : i32, i32
  }
  func.func @transform_12(%arg0: i32) -> (i32, i32) {
    %c0_i32 = arith.constant 0 : i32
    %c0_i32_0 = arith.constant 0 : i32
    %c0_i32_1 = arith.constant 0 : i32
    return %c0_i32, %c0_i32_0 : i32, i32
  }
  func.func @transform_13(%arg0: i32) -> (i32, i32) {
    %c0_i32 = arith.constant 0 : i32
    %c0_i32_0 = arith.constant 0 : i32
    %c0_i32_1 = arith.constant 0 : i32
    return %c0_i32, %c0_i32_0 : i32, i32
  }
  func.func @transform_14(%arg0: i32) -> (i32, i32) {
    %c0_i32 = arith.constant 0 : i32
    %c0_i32_0 = arith.constant 0 : i32
    %c0_i32_1 = arith.constant 0 : i32
    return %c0_i32, %c0_i32_0 : i32, i32
  }
  func.func @transform_15(%arg0: i32) -> (i32, i32, i32) {
    %c0_i32 = arith.constant 0 : i32
    %c0_i32_0 = arith.constant 0 : i32
    %c0_i32_1 = arith.constant 0 : i32
    return %arg0, %c0_i32, %c0_i32_0 : i32, i32, i32
  }
  func.func @transform_16(%arg0: i32) -> (i32, i32, i32) {
    %c0_i32 = arith.constant 0 : i32
    %c0_i32_0 = arith.constant 0 : i32
    %c0_i32_1 = arith.constant 0 : i32
    return %arg0, %c0_i32, %c0_i32_0 : i32, i32, i32
  }
  func.func @transform_17(%arg0: i32) -> (i32, i32, i32) {
    %c0_i32 = arith.constant 0 : i32
    %c0_i32_0 = arith.constant 0 : i32
    %c0_i32_1 = arith.constant 0 : i32
    return %arg0, %c0_i32, %c0_i32_0 : i32, i32, i32
  }
}

</mosaic_0001>

<llo_original>
// kernel: stage1.1
$region0: #{stage1.1}
  #allocation0 [shape = 'u32[]', space=smem, size = 0x4, offset = 0x4, fixed_abs, tag = 'smem constant byte address 0x4 - core index']
  #allocation1 [shape = 'u32[144,128]{1,0:T(1,128)}', space=vmem, size = 0x12000, scoped, tag = 'internal scratch']
  #allocation2 [shape = 'f32[18,4]{1,0:T(8,128)}', space=vmem, size = 0x3000, scoped, tag = 'scratch operand']
  #allocation3 [shape = 'f32[40,16]{1,0:T(8,128)}', space=vmem, size = 0x5000, scoped, tag = 'scratch operand']
  %s0 = inlined_call_operand.vmem [shape: f32[2,16,4], index: 0, kind: input, shape index: {}]
  %s1 = inlined_call_operand.vmem [shape: f32[2,16,4], index: 1, kind: input, shape index: {}]
  %s2 = inlined_call_operand.vmem [shape: f32[16,16], index: 2, kind: input, shape index: {}]
  %s3 = inlined_call_operand.vmem [shape: f32[1,4], index: 3, kind: input, shape index: {}]
  %s4 = inlined_call_operand.vmem [shape: f32[1,4], index: 4, kind: input, shape index: {}]
  %s5 = inlined_call_operand.vmem [shape: f32[3,4,16], index: 5, kind: input, shape index: {}]
  %s6 = inlined_call_operand.vmem [shape: f32[4,16], index: 6, kind: input, shape index: {}]
  %s7 = inlined_call_operand.vmem [shape: f32[16,32], index: 7, kind: input, shape index: {}]
  %s8 = inlined_call_operand.vmem [shape: f32[1,32], index: 8, kind: input, shape index: {}]
  %s9 = inlined_call_operand.vmem [shape: f32[32,16], index: 9, kind: input, shape index: {}]
  %s10 = inlined_call_operand.vmem [shape: f32[1,16], index: 10, kind: input, shape index: {}]
  %s11 = inlined_call_operand.vmem [shape: f32[16,32], index: 11, kind: input, shape index: {}]
  %s12 = inlined_call_operand.vmem [shape: f32[1,32], index: 12, kind: input, shape index: {}]
  %s13 = inlined_call_operand.vmem [shape: f32[32,16], index: 13, kind: input, shape index: {}]
  %s14 = inlined_call_operand.vmem [shape: f32[1,16], index: 14, kind: input, shape index: {}]
  %s15 = inlined_call_operand.hbm [shape: f32[2,16,16], index: 15, kind: output, shape index: {0}]
  %s16 = inlined_call_operand.hbm [shape: f32[2,1,4], index: 16, kind: output, shape index: {1}]
  %s17 = inlined_call_operand.hbm [shape: f32[2,1,4], index: 17, kind: output, shape index: {2}]
  %18 = xla_tuple %s15, %s16, %s17
  %s19 = sld [smem:[#allocation0]]
  $region109: #{stage1.1} parent=0
    _
  %s21 = ssub.s32 1, %s19
  %s22 = scalar_select 0, %s21, %s19
  $region1: #{stage1.1} parent=0
    #allocation4 [shape = 'u8[16384]{0}', space=vmem, size = 0x4000, scoped, tag = 'output window, operand 0']
    #allocation5 [shape = 's32[2]{0}', space=sflag, size = 0x8, scoped, tag = 'scoped memory for stage1.1']
    #allocation6 [shape = 'u8[1024]{0}', space=vmem, size = 0x400, scoped, tag = 'output window, operand 1']
    #allocation7 [shape = 's32[2]{0}', space=sflag, size = 0x8, scoped, tag = 'scoped memory for stage1.1']
    #allocation8 [shape = 'u8[1024]{0}', space=vmem, size = 0x400, scoped, tag = 'output window, operand 2']
    %23 = vsyncpa [#allocation5], 0
    %s24 = scalar_lea.sflag [#allocation5], 1
    %25 = vsyncpa %s24, 0
    %26 = vsyncpa [#allocation7], 0
    %s27 = scalar_lea.sflag [#allocation7], 1
    %28 = vsyncpa %s27, 0
    loop: start=0, step=1, limit=4
    $region2: #{stage1.1} parent=1 // loop_pre_header
      _
    $region3: #{stage1.1} parent=1 // loop_header
      %s30 = sphi 0, %s34
      %p31 = scmp.ge.s32.totalorder %s30, 4
      %s40 = sphi 0, %s42
      %s43 = sphi 0, %s40
      %s44 = sphi 0, %s43
      %s60 = sphi 0, %s44
      %s66 = sphi 0, %s68
      %s69 = sphi 0, %s66
      %s70 = sphi 0, %s69
      %s86 = sphi 0, %s70
      %s90 = sphi 0, %s90
      %s92 = sphi 0, %s90
      %s93 = sphi 0, %s92
      %s107 = sphi 0, %s93
      %s111 = sphi 0, %s111
      %s113 = sphi 0, %s111
      %s114 = sphi 0, %s113
      %s128 = sphi 0, %s114
      %s132 = sphi 0, %s132
      %s134 = sphi 0, %s132
      %s135 = sphi 0, %s134
      %s149 = sphi 0, %s135
      %s153 = sphi 0, %s153
      %s155 = sphi 0, %s153
      %s156 = sphi 0, %s155
      %s170 = sphi 0, %s156
      %s174 = sphi 0, %s174
      %s176 = sphi 0, %s174
      %s177 = sphi 0, %s176
      %s191 = sphi 0, %s177
      %s195 = sphi 0, %s195
      %s197 = sphi 0, %s195
      %s198 = sphi 0, %s197
      %s212 = sphi 0, %s198
      %s216 = sphi 0, %s216
      %s218 = sphi 0, %s216
      %s219 = sphi 0, %s218
      %s233 = sphi 0, %s219
      %s237 = sphi 0, %s237
      %s239 = sphi 0, %s237
      %s240 = sphi 0, %s239
      %s254 = sphi 0, %s240
      %s258 = sphi 0, %s258
      %s260 = sphi 0, %s258
      %s261 = sphi 0, %s260
      %s275 = sphi 0, %s261
      %s279 = sphi 0, %s279
      %s281 = sphi 0, %s279
      %s282 = sphi 0, %s281
      %s296 = sphi 0, %s282
      %s300 = sphi 0, %s300
      %s302 = sphi 0, %s300
      %s303 = sphi 0, %s302
      %s317 = sphi 0, %s303
      %s321 = sphi 0, %s321
      %s323 = sphi 0, %s321
      %s324 = sphi 0, %s323
      %s338 = sphi 0, %s324
      %s342 = sphi 0, %s342
      %s344 = sphi 0, %s342
      %s345 = sphi 0, %s344
      %s359 = sphi 0, %s345
      %s365 = sphi 0, %s367
      %s368 = sphi 0, %s365
      %s369 = sphi 0, %s368
      %s385 = sphi 0, %s369
      %s391 = sphi 0, %s393
      %s394 = sphi 0, %s391
      %s395 = sphi 0, %s394
      %s411 = sphi 0, %s395
      %s417 = sphi 0, %s419
      %s420 = sphi 0, %s417
      %s421 = sphi 0, %s420
      %s437 = sphi 0, %s421
    $region4: #{stage1.1} parent=1 // loop_header_branch
      %33 = sbr.rel (%p31) target = $region8
    $region5: #{stage1.1} parent=1 // loop_body
      %s35 = ssub.s32 %s30, 1
      %s36 = ssub.s32 %s30, 2
      %s37 = sadd.s32 %s30, 1
      %s38 = ssub.s32 %s30, %s37
      %p39 = scmp.eq.s32.totalorder %s38, 0
      %s41 = sadd.s32 %s40, 1
      %s42 = scalar_select %p39, %s40, %s41
      %p45 = pneg %p39
      %p46 = scmp.eq.s32.totalorder %s30, 1
      %p47 = por %p45, %p46
      %p48 = scmp.ne.s32.totalorder %s40, %s43
      %p49 = scmp.eq.s32.totalorder %s30, 0
      %p50 = por %p48, %p49
      %p51 = scmp.ne.s32.totalorder %s40, %s43
      %p52 = scmp.eq.s32.totalorder %s35, 1
      %p53 = por %p51, %p52
      %p54 = scmp.ne.s32.totalorder %s43, %s44
      %p55 = scmp.eq.s32.totalorder %s35, 0
      %p56 = por %p54, %p55
      %p57 = scmp.ne.s32.totalorder %s43, %s44
      %p58 = scmp.eq.s32.totalorder %s36, 1
      %p59 = por %p57, %p58
      %p61 = scmp.ne.s32.totalorder %s44, %s60
      %p62 = scmp.eq.s32.totalorder %s36, 0
      %p63 = por %p61, %p62
      %s64 = ssub.s32 %s30, %s37
      %p65 = scmp.eq.s32.totalorder %s64, 0
      %s67 = sadd.s32 %s66, 1
      %s68 = scalar_select %p65, %s66, %s67
      %p71 = pneg %p65
      %p72 = scmp.eq.s32.totalorder %s30, 1
      %p73 = por %p71, %p72
      %p74 = scmp.ne.s32.totalorder %s66, %s69
      %p75 = scmp.eq.s32.totalorder %s30, 0
      %p76 = por %p74, %p75
      %p77 = scmp.ne.s32.totalorder %s66, %s69
      %p78 = scmp.eq.s32.totalorder %s35, 1
      %p79 = por %p77, %p78
      %p80 = scmp.ne.s32.totalorder %s69, %s70
      %p81 = scmp.eq.s32.totalorder %s35, 0
      %p82 = por %p80, %p81
      %p83 = scmp.ne.s32.totalorder %s69, %s70
      %p84 = scmp.eq.s32.totalorder %s36, 1
      %p85 = por %p83, %p84
      %p87 = scmp.ne.s32.totalorder %s70, %s86
      %p88 = scmp.eq.s32.totalorder %s36, 0
      %p89 = por %p87, %p88
      %s91 = sadd.s32 %s90, 1
      %p94 = scmp.eq.s32.totalorder %s30, 1
      %p95 = scmp.ne.s32.totalorder %s90, %s92
      %p96 = scmp.eq.s32.totalorder %s30, 0
      %p97 = por %p95, %p96
      %p98 = scmp.ne.s32.totalorder %s90, %s92
      %p99 = scmp.eq.s32.totalorder %s35, 1
      %p100 = por %p98, %p99
      %p101 = scmp.ne.s32.totalorder %s92, %s93
      %p102 = scmp.eq.s32.totalorder %s35, 0
      %p103 = por %p101, %p102
      %p104 = scmp.ne.s32.totalorder %s92, %s93
      %p105 = scmp.eq.s32.totalorder %s36, 1
      %p106 = por %p104, %p105
      %p108 = scmp.ne.s32.totalorder %s93, %s107
      %p109 = scmp.eq.s32.totalorder %s36, 0
      %p110 = por %p108, %p109
      %s112 = sadd.s32 %s111, 1
      %p115 = scmp.eq.s32.totalorder %s30, 1
      %p116 = scmp.ne.s32.totalorder %s111, %s113
      %p117 = scmp.eq.s32.totalorder %s30, 0
      %p118 = por %p116, %p117
      %p119 = scmp.ne.s32.totalorder %s111, %s113
      %p120 = scmp.eq.s32.totalorder %s35, 1
      %p121 = por %p119, %p120
      %p122 = scmp.ne.s32.totalorder %s113, %s114
      %p123 = scmp.eq.s32.totalorder %s35, 0
      %p124 = por %p122, %p123
      %p125 = scmp.ne.s32.totalorder %s113, %s114
      %p126 = scmp.eq.s32.totalorder %s36, 1
      %p127 = por %p125, %p126
      %p129 = scmp.ne.s32.totalorder %s114, %s128
      %p130 = scmp.eq.s32.totalorder %s36, 0
      %p131 = por %p129, %p130
      %s133 = sadd.s32 %s132, 1
      %p136 = scmp.eq.s32.totalorder %s30, 1
      %p137 = scmp.ne.s32.totalorder %s132, %s134
      %p138 = scmp.eq.s32.totalorder %s30, 0
      %p139 = por %p137, %p138
      %p140 = scmp.ne.s32.totalorder %s132, %s134
      %p141 = scmp.eq.s32.totalorder %s35, 1
      %p142 = por %p140, %p141
      %p143 = scmp.ne.s32.totalorder %s134, %s135
      %p144 = scmp.eq.s32.totalorder %s35, 0
      %p145 = por %p143, %p144
      %p146 = scmp.ne.s32.totalorder %s134, %s135
      %p147 = scmp.eq.s32.totalorder %s36, 1
      %p148 = por %p146, %p147
      %p150 = scmp.ne.s32.totalorder %s135, %s149
      %p151 = scmp.eq.s32.totalorder %s36, 0
      %p152 = por %p150, %p151
      %s154 = sadd.s32 %s153, 1
      %p157 = scmp.eq.s32.totalorder %s30, 1
      %p158 = scmp.ne.s32.totalorder %s153, %s155
      %p159 = scmp.eq.s32.totalorder %s30, 0
      %p160 = por %p158, %p159
      %p161 = scmp.ne.s32.totalorder %s153, %s155
      %p162 = scmp.eq.s32.totalorder %s35, 1
      %p163 = por %p161, %p162
      %p164 = scmp.ne.s32.totalorder %s155, %s156
      %p165 = scmp.eq.s32.totalorder %s35, 0
      %p166 = por %p164, %p165
      %p167 = scmp.ne.s32.totalorder %s155, %s156
      %p168 = scmp.eq.s32.totalorder %s36, 1
      %p169 = por %p167, %p168
      %p171 = scmp.ne.s32.totalorder %s156, %s170
      %p172 = scmp.eq.s32.totalorder %s36, 0
      %p173 = por %p171, %p172
      %s175 = sadd.s32 %s174, 1
      %p178 = scmp.eq.s32.totalorder %s30, 1
      %p179 = scmp.ne.s32.totalorder %s174, %s176
      %p180 = scmp.eq.s32.totalorder %s30, 0
      %p181 = por %p179, %p180
      %p182 = scmp.ne.s32.totalorder %s174, %s176
      %p183 = scmp.eq.s32.totalorder %s35, 1
      %p184 = por %p182, %p183
      %p185 = scmp.ne.s32.totalorder %s176, %s177
      %p186 = scmp.eq.s32.totalorder %s35, 0
      %p187 = por %p185, %p186
      %p188 = scmp.ne.s32.totalorder %s176, %s177
      %p189 = scmp.eq.s32.totalorder %s36, 1
      %p190 = por %p188, %p189
      %p192 = scmp.ne.s32.totalorder %s177, %s191
      %p193 = scmp.eq.s32.totalorder %s36, 0
      %p194 = por %p192, %p193
      %s196 = sadd.s32 %s195, 1
      %p199 = scmp.eq.s32.totalorder %s30, 1
      %p200 = scmp.ne.s32.totalorder %s195, %s197
      %p201 = scmp.eq.s32.totalorder %s30, 0
      %p202 = por %p200, %p201
      %p203 = scmp.ne.s32.totalorder %s195, %s197
      %p204 = scmp.eq.s32.totalorder %s35, 1
      %p205 = por %p203, %p204
      %p206 = scmp.ne.s32.totalorder %s197, %s198
      %p207 = scmp.eq.s32.totalorder %s35, 0
      %p208 = por %p206, %p207
      %p209 = scmp.ne.s32.totalorder %s197, %s198
      %p210 = scmp.eq.s32.totalorder %s36, 1
      %p211 = por %p209, %p210
      %p213 = scmp.ne.s32.totalorder %s198, %s212
      %p214 = scmp.eq.s32.totalorder %s36, 0
      %p215 = por %p213, %p214
      %s217 = sadd.s32 %s216, 1
      %p220 = scmp.eq.s32.totalorder %s30, 1
      %p221 = scmp.ne.s32.totalorder %s216, %s218
      %p222 = scmp.eq.s32.totalorder %s30, 0
      %p223 = por %p221, %p222
      %p224 = scmp.ne.s32.totalorder %s216, %s218
      %p225 = scmp.eq.s32.totalorder %s35, 1
      %p226 = por %p224, %p225
      %p227 = scmp.ne.s32.totalorder %s218, %s219
      %p228 = scmp.eq.s32.totalorder %s35, 0
      %p229 = por %p227, %p228
      %p230 = scmp.ne.s32.totalorder %s218, %s219
      %p231 = scmp.eq.s32.totalorder %s36, 1
      %p232 = por %p230, %p231
      %p234 = scmp.ne.s32.totalorder %s219, %s233
      %p235 = scmp.eq.s32.totalorder %s36, 0
      %p236 = por %p234, %p235
      %s238 = sadd.s32 %s237, 1
      %p241 = scmp.eq.s32.totalorder %s30, 1
      %p242 = scmp.ne.s32.totalorder %s237, %s239
      %p243 = scmp.eq.s32.totalorder %s30, 0
      %p244 = por %p242, %p243
      %p245 = scmp.ne.s32.totalorder %s237, %s239
      %p246 = scmp.eq.s32.totalorder %s35, 1
      %p247 = por %p245, %p246
      %p248 = scmp.ne.s32.totalorder %s239, %s240
      %p249 = scmp.eq.s32.totalorder %s35, 0
      %p250 = por %p248, %p249
      %p251 = scmp.ne.s32.totalorder %s239, %s240
      %p252 = scmp.eq.s32.totalorder %s36, 1
      %p253 = por %p251, %p252
      %p255 = scmp.ne.s32.totalorder %s240, %s254
      %p256 = scmp.eq.s32.totalorder %s36, 0
      %p257 = por %p255, %p256
      %s259 = sadd.s32 %s258, 1
      %p262 = scmp.eq.s32.totalorder %s30, 1
      %p263 = scmp.ne.s32.totalorder %s258, %s260
      %p264 = scmp.eq.s32.totalorder %s30, 0
      %p265 = por %p263, %p264
      %p266 = scmp.ne.s32.totalorder %s258, %s260
      %p267 = scmp.eq.s32.totalorder %s35, 1
      %p268 = por %p266, %p267
      %p269 = scmp.ne.s32.totalorder %s260, %s261
      %p270 = scmp.eq.s32.totalorder %s35, 0
      %p271 = por %p269, %p270
      %p272 = scmp.ne.s32.totalorder %s260, %s261
      %p273 = scmp.eq.s32.totalorder %s36, 1
      %p274 = por %p272, %p273
      %p276 = scmp.ne.s32.totalorder %s261, %s275
      %p277 = scmp.eq.s32.totalorder %s36, 0
      %p278 = por %p276, %p277
      %s280 = sadd.s32 %s279, 1
      %p283 = scmp.eq.s32.totalorder %s30, 1
      %p284 = scmp.ne.s32.totalorder %s279, %s281
      %p285 = scmp.eq.s32.totalorder %s30, 0
      %p286 = por %p284, %p285
      %p287 = scmp.ne.s32.totalorder %s279, %s281
      %p288 = scmp.eq.s32.totalorder %s35, 1
      %p289 = por %p287, %p288
      %p290 = scmp.ne.s32.totalorder %s281, %s282
      %p291 = scmp.eq.s32.totalorder %s35, 0
      %p292 = por %p290, %p291
      %p293 = scmp.ne.s32.totalorder %s281, %s282
      %p294 = scmp.eq.s32.totalorder %s36, 1
      %p295 = por %p293, %p294
      %p297 = scmp.ne.s32.totalorder %s282, %s296
      %p298 = scmp.eq.s32.totalorder %s36, 0
      %p299 = por %p297, %p298
      %s301 = sadd.s32 %s300, 1
      %p304 = scmp.eq.s32.totalorder %s30, 1
      %p305 = scmp.ne.s32.totalorder %s300, %s302
      %p306 = scmp.eq.s32.totalorder %s30, 0
      %p307 = por %p305, %p306
      %p308 = scmp.ne.s32.totalorder %s300, %s302
      %p309 = scmp.eq.s32.totalorder %s35, 1
      %p310 = por %p308, %p309
      %p311 = scmp.ne.s32.totalorder %s302, %s303
      %p312 = scmp.eq.s32.totalorder %s35, 0
      %p313 = por %p311, %p312
      %p314 = scmp.ne.s32.totalorder %s302, %s303
      %p315 = scmp.eq.s32.totalorder %s36, 1
      %p316 = por %p314, %p315
      %p318 = scmp.ne.s32.totalorder %s303, %s317
      %p319 = scmp.eq.s32.totalorder %s36, 0
      %p320 = por %p318, %p319
      %s322 = sadd.s32 %s321, 1
      %p325 = scmp.eq.s32.totalorder %s30, 1
      %p326 = scmp.ne.s32.totalorder %s321, %s323
      %p327 = scmp.eq.s32.totalorder %s30, 0
      %p328 = por %p326, %p327
      %p329 = scmp.ne.s32.totalorder %s321, %s323
      %p330 = scmp.eq.s32.totalorder %s35, 1
      %p331 = por %p329, %p330
      %p332 = scmp.ne.s32.totalorder %s323, %s324
      %p333 = scmp.eq.s32.totalorder %s35, 0
      %p334 = por %p332, %p333
      %p335 = scmp.ne.s32.totalorder %s323, %s324
      %p336 = scmp.eq.s32.totalorder %s36, 1
      %p337 = por %p335, %p336
      %p339 = scmp.ne.s32.totalorder %s324, %s338
      %p340 = scmp.eq.s32.totalorder %s36, 0
      %p341 = por %p339, %p340
      %s343 = sadd.s32 %s342, 1
      %p346 = scmp.eq.s32.totalorder %s30, 1
      %p347 = scmp.ne.s32.totalorder %s342, %s344
      %p348 = scmp.eq.s32.totalorder %s30, 0
      %p349 = por %p347, %p348
      %p350 = scmp.ne.s32.totalorder %s342, %s344
      %p351 = scmp.eq.s32.totalorder %s35, 1
      %p352 = por %p350, %p351
      %p353 = scmp.ne.s32.totalorder %s344, %s345
      %p354 = scmp.eq.s32.totalorder %s35, 0
      %p355 = por %p353, %p354
      %p356 = scmp.ne.s32.totalorder %s344, %s345
      %p357 = scmp.eq.s32.totalorder %s36, 1
      %p358 = por %p356, %p357
      %p360 = scmp.ne.s32.totalorder %s345, %s359
      %p361 = scmp.eq.s32.totalorder %s36, 0
      %p362 = por %p360, %p361
      %s363 = ssub.s32 %s30, %s37
      %p364 = scmp.eq.s32.totalorder %s363, 0
      %s366 = sadd.s32 %s365, 1
      %s367 = scalar_select %p364, %s365, %s366
      %p370 = pneg %p364
      %p371 = scmp.eq.s32.totalorder %s30, 1
      %p372 = por %p370, %p371
      %p373 = scmp.ne.s32.totalorder %s365, %s368
      %p374 = scmp.eq.s32.totalorder %s30, 0
      %p375 = por %p373, %p374
      %p376 = scmp.ne.s32.totalorder %s365, %s368
      %p377 = scmp.eq.s32.totalorder %s35, 1
      %p378 = por %p376, %p377
      %p379 = scmp.ne.s32.totalorder %s368, %s369
      %p380 = scmp.eq.s32.totalorder %s35, 0
      %p381 = por %p379, %p380
      %p382 = scmp.ne.s32.totalorder %s368, %s369
      %p383 = scmp.eq.s32.totalorder %s36, 1
      %p384 = por %p382, %p383
      %p386 = scmp.ne.s32.totalorder %s369, %s385
      %p387 = scmp.eq.s32.totalorder %s36, 0
      %p388 = por %p386, %p387
      %s389 = ssub.s32 %s30, %s37
      %p390 = scmp.eq.s32.totalorder %s389, 0
      %s392 = sadd.s32 %s391, 1
      %s393 = scalar_select %p390, %s391, %s392
      %p396 = pneg %p390
      %p397 = scmp.eq.s32.totalorder %s30, 1
      %p398 = por %p396, %p397
      %p399 = scmp.ne.s32.totalorder %s391, %s394
      %p400 = scmp.eq.s32.totalorder %s30, 0
      %p401 = por %p399, %p400
      %p402 = scmp.ne.s32.totalorder %s391, %s394
      %p403 = scmp.eq.s32.totalorder %s35, 1
      %p404 = por %p402, %p403
      %p405 = scmp.ne.s32.totalorder %s394, %s395
      %p406 = scmp.eq.s32.totalorder %s35, 0
      %p407 = por %p405, %p406
      %p408 = scmp.ne.s32.totalorder %s394, %s395
      %p409 = scmp.eq.s32.totalorder %s36, 1
      %p410 = por %p408, %p409
      %p412 = scmp.ne.s32.totalorder %s395, %s411
      %p413 = scmp.eq.s32.totalorder %s36, 0
      %p414 = por %p412, %p413
      %s415 = ssub.s32 %s30, %s37
      %p416 = scmp.eq.s32.totalorder %s415, 0
      %s418 = sadd.s32 %s417, 1
      %s419 = scalar_select %p416, %s417, %s418
      %p422 = pneg %p416
      %p423 = scmp.eq.s32.totalorder %s30, 1
      %p424 = por %p422, %p423
      %p425 = scmp.ne.s32.totalorder %s417, %s420
      %p426 = scmp.eq.s32.totalorder %s30, 0
      %p427 = por %p425, %p426
      %p428 = scmp.ne.s32.totalorder %s417, %s420
      %p429 = scmp.eq.s32.totalorder %s35, 1
      %p430 = por %p428, %p429
      %p431 = scmp.ne.s32.totalorder %s420, %s421
      %p432 = scmp.eq.s32.totalorder %s35, 0
      %p433 = por %p431, %p432
      %p434 = scmp.ne.s32.totalorder %s420, %s421
      %p435 = scmp.eq.s32.totalorder %s36, 1
      %p436 = por %p434, %p435
      %p438 = scmp.ne.s32.totalorder %s421, %s437
      %p439 = scmp.eq.s32.totalorder %s36, 0
      %p440 = por %p438, %p439
      %p441 = scmp.le.s32.totalorder 1, %s30
      %p442 = scmp.lt.s32.totalorder %s30, 3
      %p443 = pnand %p441, %p442
      %p444 = pneg %p443
      // Predicated region
      $region9: #{stage1.1} parent=5 // pred_check
        _
      $region10: #{stage1.1} parent=5 // pred_check_branch
        %446 = sbr.rel (%p443) target = $region12
      $region11: #{stage1.1} parent=5 // pred_region
        %s447 = ssub.s32 %s30, 1
        // Predicated region
        $region13: #{stage1.1} parent=11 // pred_check
          %p448 = pneg %p103
        $region14: #{stage1.1} parent=11 // pred_check_branch
          %450 = sbr.rel (%p448) target = $region16
        $region15: #{stage1.1} parent=11 // pred_region
          _
        $region16: #{stage1.1} parent=11 // pred_fallthru
          _
        // Predicated region
        $region17: #{stage1.1} parent=11 // pred_check
          %p451 = pneg %p124
        $region18: #{stage1.1} parent=11 // pred_check_branch
          %453 = sbr.rel (%p451) target = $region20
        $region19: #{stage1.1} parent=11 // pred_region
          _
        $region20: #{stage1.1} parent=11 // pred_fallthru
          _
        // Predicated region
        $region21: #{stage1.1} parent=11 // pred_check
          %p454 = pneg %p145
        $region22: #{stage1.1} parent=11 // pred_check_branch
          %456 = sbr.rel (%p454) target = $region24
        $region23: #{stage1.1} parent=11 // pred_region
          _
        $region24: #{stage1.1} parent=11 // pred_fallthru
          _
        // Predicated region
        $region25: #{stage1.1} parent=11 // pred_check
          %p457 = pneg %p166
        $region26: #{stage1.1} parent=11 // pred_check_branch
          %459 = sbr.rel (%p457) target = $region28
        $region27: #{stage1.1} parent=11 // pred_region
          _
        $region28: #{stage1.1} parent=11 // pred_fallthru
          _
        // Predicated region
        $region29: #{stage1.1} parent=11 // pred_check
          %p460 = pneg %p187
        $region30: #{stage1.1} parent=11 // pred_check_branch
          %462 = sbr.rel (%p460) target = $region32
        $region31: #{stage1.1} parent=11 // pred_region
          _
        $region32: #{stage1.1} parent=11 // pred_fallthru
          _
        // Predicated region
        $region33: #{stage1.1} parent=11 // pred_check
          %p463 = pneg %p208
        $region34: #{stage1.1} parent=11 // pred_check_branch
          %465 = sbr.rel (%p463) target = $region36
        $region35: #{stage1.1} parent=11 // pred_region
          _
        $region36: #{stage1.1} parent=11 // pred_fallthru
          _
        // Predicated region
        $region37: #{stage1.1} parent=11 // pred_check
          %p466 = pneg %p229
        $region38: #{stage1.1} parent=11 // pred_check_branch
          %468 = sbr.rel (%p466) target = $region40
        $region39: #{stage1.1} parent=11 // pred_region
          _
        $region40: #{stage1.1} parent=11 // pred_fallthru
          _
        // Predicated region
        $region41: #{stage1.1} parent=11 // pred_check
          %p469 = pneg %p250
        $region42: #{stage1.1} parent=11 // pred_check_branch
          %471 = sbr.rel (%p469) target = $region44
        $region43: #{stage1.1} parent=11 // pred_region
          _
        $region44: #{stage1.1} parent=11 // pred_fallthru
          _
        // Predicated region
        $region45: #{stage1.1} parent=11 // pred_check
          %p472 = pneg %p271
        $region46: #{stage1.1} parent=11 // pred_check_branch
          %474 = sbr.rel (%p472) target = $region48
        $region47: #{stage1.1} parent=11 // pred_region
          _
        $region48: #{stage1.1} parent=11 // pred_fallthru
          _
        // Predicated region
        $region49: #{stage1.1} parent=11 // pred_check
          %p475 = pneg %p292
        $region50: #{stage1.1} parent=11 // pred_check_branch
          %477 = sbr.rel (%p475) target = $region52
        $region51: #{stage1.1} parent=11 // pred_region
          _
        $region52: #{stage1.1} parent=11 // pred_fallthru
          _
        // Predicated region
        $region53: #{stage1.1} parent=11 // pred_check
          %p478 = pneg %p313
        $region54: #{stage1.1} parent=11 // pred_check_branch
          %480 = sbr.rel (%p478) target = $region56
        $region55: #{stage1.1} parent=11 // pred_region
          _
        $region56: #{stage1.1} parent=11 // pred_fallthru
          _
        // Predicated region
        $region57: #{stage1.1} parent=11 // pred_check
          %p481 = pneg %p334
        $region58: #{stage1.1} parent=11 // pred_check_branch
          %483 = sbr.rel (%p481) target = $region60
        $region59: #{stage1.1} parent=11 // pred_region
          _
        $region60: #{stage1.1} parent=11 // pred_fallthru
          _
        // Predicated region
        $region61: #{stage1.1} parent=11 // pred_check
          %p484 = pneg %p355
        $region62: #{stage1.1} parent=11 // pred_check_branch
          %486 = sbr.rel (%p484) target = $region64
        $region63: #{stage1.1} parent=11 // pred_region
          _
        $region64: #{stage1.1} parent=11 // pred_fallthru
          _
      $region12: #{stage1.1} parent=5 // pred_fallthru
        _
      %p487 = scmp.lt.s32.totalorder %s30, 2
      // Predicated region
      $region65: #{stage1.1} parent=5 // pred_check
        %p488 = pneg %p487
      $region66: #{stage1.1} parent=5 // pred_check_branch
        %490 = sbr.rel (%p488) target = $region68
      $region67: #{stage1.1} parent=5 // pred_region
        // Predicated region
        $region69: #{stage1.1} parent=67 // pred_check
          %p491 = pneg %p50
        $region70: #{stage1.1} parent=67 // pred_check_branch
          %493 = sbr.rel (%p491) target = $region72
        $region71: #{stage1.1} parent=67 // pred_region
          %p494 = scmp.lt.s32.totalorder %s30, 1
          %s495 = scalar_select %p494, %s30, 1
          %s496 = smul.addr %s495, 2
          %s497 = smul.addr %s496, 8
          %s498 = scalar_lea.vmem %s0, %s497
        $region72: #{stage1.1} parent=67 // pred_fallthru
          _
        // Predicated region
        $region73: #{stage1.1} parent=67 // pred_check
          %p499 = pneg %p76
        $region74: #{stage1.1} parent=67 // pred_check_branch
          %501 = sbr.rel (%p499) target = $region76
        $region75: #{stage1.1} parent=67 // pred_region
          %p502 = scmp.lt.s32.totalorder %s30, 1
          %s503 = scalar_select %p502, %s30, 1
          %s504 = smul.addr %s503, 2
          %s505 = smul.addr %s504, 8
          %s506 = scalar_lea.vmem %s1, %s505
        $region76: #{stage1.1} parent=67 // pred_fallthru
          _
      $region68: #{stage1.1} parent=5 // pred_fallthru
        _
      %p507 = scmp.le.s32.totalorder 1, %s30
      %p508 = scmp.lt.s32.totalorder %s30, 3
      %p509 = pnand %p507, %p508
      %p510 = pneg %p509
      // Predicated region
      $region77: #{stage1.1} parent=5 // pred_check
        _
      $region78: #{stage1.1} parent=5 // pred_check_branch
        %512 = sbr.rel (%p509) target = $region80
      $region79: #{stage1.1} parent=5 // pred_region
        %s513 = ssub.s32 %s30, 1
        %p514 = scmp.lt.s32.totalorder %s35, 1
        %s515 = scalar_select %p514, %s35, 1
        %s516 = smul.addr %s515, 2
        %s517 = smul.addr %s516, 8
        %s518 = scalar_lea.vmem %s0, %s517
        %p519 = pneg %p56
        %p520 = pneg %p53
        %p521 = scmp.lt.s32.totalorder %s35, 1
        %s522 = scalar_select %p521, %s35, 1
        %s523 = smul.addr %s522, 2
        %s524 = smul.addr %s523, 8
        %s525 = scalar_lea.vmem %s1, %s524
        %p526 = pneg %p82
        %p527 = pneg %p79
        %p528 = pneg %p103
        %p529 = pneg %p100
        %p530 = pneg %p124
        %p531 = pneg %p121
        %p532 = pneg %p145
        %p533 = pneg %p142
        %p534 = pneg %p166
        %p535 = pneg %p163
        %p536 = pneg %p187
        %p537 = pneg %p184
        %p538 = pneg %p208
        %p539 = pneg %p205
        %p540 = pneg %p229
        %p541 = pneg %p226
        %p542 = pneg %p250
        %p543 = pneg %p247
        %p544 = pneg %p271
        %p545 = pneg %p268
        %p546 = pneg %p292
        %p547 = pneg %p289
        %p548 = pneg %p313
        %p549 = pneg %p310
        %p550 = pneg %p334
        %p551 = pneg %p331
        %p552 = pneg %p355
        %p553 = pneg %p352
        %p554 = pneg %p381
        %p555 = pneg %p378
        %s556 = sand.u32 %s368, 1
        %s557 = scalar_lea.sflag [#allocation5], %s556
        %s558 = sand.u32 %s368, 1
        %s559 = smul.addr %s558, 16
        %s560 = scalar_lea.vmem [#allocation4], %s559
        %p561 = pneg %p407
        %p562 = pneg %p404
        %s563 = sand.u32 %s35, 1
        %s564 = scalar_lea.sflag [#allocation7], %s563
        %s565 = sand.u32 %s394, 1
        %s566 = scalar_lea.vmem [#allocation6], %s565
        %p567 = pneg %p433
        %p568 = pneg %p430
        %s569 = sand.u32 %s35, 1
        %s570 = scalar_lea.sflag [#allocation7], %s569
        %s571 = sand.u32 %s420, 1
        %s572 = scalar_lea.vmem [#allocation8], %s571
        %p573 = scmp.lt.s32.totalorder %s35, 1
        %s574 = scalar_select %p573, %s35, 1
        %s575 = smul.addr %s574, 2
        %s576 = smul.addr %s575, 8
        %s577 = scalar_lea.vmem %s0, %s576
        %p578 = scmp.lt.s32.totalorder %s35, 1
        %s579 = scalar_select %p578, %s35, 1
        %s580 = smul.addr %s579, 2
        %s581 = smul.addr %s580, 8
        %s582 = scalar_lea.vmem %s1, %s581
        %v583 = vld [vmem:[%s577] sm:$0xff]
        %v584 = vld [vmem:[%s577 + $0x8] sm:$0xff]
        %vm585 = vcmask 31744
        %v586 = vsel %vm585, %v583, 0.0
        %v587 = vsel %vm585, %v584, 0.0
        %v588 = vadd.f32 %v586, %v587
        %v589 = vrot.slane %v588, 4
        %v590 = vadd.f32 %v588, %v589
        %v591 = vrot.slane %v590, 2
        %v592 = vadd.f32 %v590, %v591
        %v593 = vrot.slane %v592, 1
        %v594 = vadd.f32 %v592, %v593
        %v595 = vrcp.pop 16.0
        %v596 = vmul.f32 %v594, %v595
        %v597 = vsub.f32 %v583, %v596
        %v598 = vsub.f32 %v584, %v596
        %v599 = vmul.f32 %v597, %v597
        %v600 = vmul.f32 %v598, %v598
        %v601 = vsel %vm585, %v599, 0.0
        %v602 = vsel %vm585, %v600, 0.0
        %v603 = vadd.f32 %v601, %v602
        %v604 = vrot.slane %v603, 4
        %v605 = vadd.f32 %v603, %v604
        %v606 = vrot.slane %v605, 2
        %v607 = vadd.f32 %v605, %v606
        %v608 = vrot.slane %v607, 1
        %v609 = vadd.f32 %v607, %v608
        %v610 = vmul.f32 %v609, %v595
        %v611 = vadd.f32 %v610, 1e-05
        %v612 = vrsqrt.pop %v611
        %v613 = vmul.f32 %v611, %v612
        %vm614 = vcmp.eq.f32.partialorder %v611, inf
        %v615 = vsel %vm614, %v611, %v613
        %vm616 = vcmp.eq.f32.partialorder %v611, 0.0
        %v617 = vand.u32 %v611, 2147483648
        %v618 = vsel %vm616, %v617, %v615
        %vm619 = vcmask 24576
        %620 = vst.msk [vmem:[%s566] sm:$0x1] %vm619, %v596
        %621 = vst.msk [vmem:[%s572] sm:$0x1] %vm619, %v618
        %v622 = vrcp.pop %v618
        %v623 = vmul.f32 %v597, %v622
        %v624 = vmul.f32 %v598, %v622
        %v625 = vld [vmem:[%s3] sm:$0x1]
        %v627 = vlaneseq
        %v628 = vshrl.u32 %v627, 7
        %v629 = vsub.s32 0, %v628
        %v630 = vrot.slane %v625, %v629
        %v632 = vmul.f32 %v623, %v630
        %v633 = vmul.f32 %v624, %v630
        %v634 = vld [vmem:[%s4] sm:$0x1]
        %v636 = vlaneseq
        %v637 = vshrl.u32 %v636, 7
        %v638 = vsub.s32 0, %v637
        %v639 = vrot.slane %v634, %v638
        %v641 = vadd.f32 %v632, %v639
        %v642 = vadd.f32 %v633, %v639
        %vm643 = vcmask 31751
        %644 = vst.msk [vmem:[#allocation2 - $0x7] sm:$0x80] %vm643, %v642
        %645 = vst.msk [vmem:[#allocation2 + $0x1] sm:$0xff] %vm585, %v641
        %646 = vst.msk [vmem:[#allocation2 + $0x9] sm:$0xff] %vm585, %v642
        %647 = vst.msk [vmem:[#allocation2 + $0x11] sm:$0x1] %vm619, %v641
        %v648 = vld [vmem:[#allocation2] sm:$0xff]
        %v649 = vld [vmem:[#allocation2 + $0x8] sm:$0xff]
        %v650 = vld [vmem:[#allocation2 + $0x10] sm:$0x3]
        %v651 = vld [vmem:[%s5] sm:$0xf]
        %s652 = scalar_lea.vmem %s5, 4
        %v653 = vld [vmem:[%s652] sm:$0xf]
        %vm657 = vcmask 1046528
        %v658 = vrot.slane %v648, 1
        %v659 = vrot.slane %v649, 1
        %v660 = vsel %vm657, %v658, %v659
        %v661 = vrot.slane %v650, 1
        %v662 = vsel %vm657, %v659, %v661
        %v663 = vsel %vm585, %v660, 0
        %v665 = vsel %vm585, %v662, 0
        %vm667 = vcmask 1043456
        %v669 = vsel %vm667, %v653, 0
        %671 = vmatprep.subr.mxu0 0.0
        %672 = vmatpush1.msra.mxu0 %v669
        %673 = vmatprep.subr.mxu0 0.0
        %674 = vmatpush1.msra.mxu0 0.0
        %675 = vmatprep.subr.mxu0 0.0
        %676 = vmatpush1.msra.mxu0 0.0
        %677 = vmatprep.subr.mxu0 0.0
        %678 = vmatpush1.msra.mxu0 0.0
        %679 = vmatprep.subr.mxu0 0.0
        %680 = vmatpush1.msra.mxu0 0.0
        %681 = vmatprep.subr.mxu0 0.0
        %682 = vmatpush1.msra.mxu0 0.0
        %683 = vmatprep.subr.mxu0 0.0
        %684 = vmatpush1.msra.mxu0 0.0
        %685 = vmatprep.subr.mxu0 0.0
        %686 = vmatpush1.msra.mxu0 0.0
        %687 = vmatprep.subr.mxu0 0.0
        %688 = vmatpush1.msra.mxu0 0.0
        %689 = vmatprep.subr.mxu0 0.0
        %690 = vmatpush1.msra.mxu0 0.0
        %691 = vmatprep.subr.mxu0 0.0
        %692 = vmatpush1.msra.mxu0 0.0
        %693 = vmatprep.subr.mxu0 0.0
        %694 = vmatpush1.msra.mxu0 0.0
        %695 = vmatprep.subr.mxu0 0.0
        %696 = vmatpush1.msra.mxu0 0.0
        %697 = vmatprep.subr.mxu0 0.0
        %698 = vmatpush1.msra.mxu0 0.0
        %699 = vmatprep.subr.mxu0 0.0
        %700 = vmatpush1.msra.mxu0 0.0
        %701 = vmatprep.subr.mxu0 0.0
        %702 = vmatpush1.msra.mxu0 0.0
        %703 = vmatprep.subr.mxu0 0.0
        %704 = vmatpush1.msra.mxu0 0.0
        %705 = vmatprep.subr.mxu0 0.0
        %706 = vmatpush1.msra.mxu0 0.0
        %707 = vmatprep.subr.mxu0 0.0
        %708 = vmatpush1.msra.mxu0 0.0
        %709 = vmatprep.subr.mxu0 0.0
        %710 = vmatpush1.msra.mxu0 0.0
        %711 = vmatprep.subr.mxu0 0.0
        %712 = vmatpush1.msra.mxu0 0.0
        %713 = vmatprep.subr.mxu0 0.0
        %714 = vmatpush1.msra.mxu0 0.0
        %715 = vmatprep.subr.mxu0 0.0
        %716 = vmatpush1.msra.mxu0 0.0
        %717 = vmatprep.subr.mxu0 0.0
        %718 = vmatpush1.msra.mxu0 0.0
        %719 = vmatprep.subr.mxu0 0.0
        %720 = vmatpush1.msra.mxu0 0.0
        %721 = vmatprep.subr.mxu0 0.0
        %722 = vmatpush1.msra.mxu0 0.0
        %723 = vmatprep.subr.mxu0 0.0
        %724 = vmatpush1.msra.mxu0 0.0
        %725 = vmatprep.subr.mxu0 0.0
        %726 = vmatpush1.msra.mxu0 0.0
        %727 = vmatprep.subr.mxu0 0.0
        %728 = vmatpush1.msra.mxu0 0.0
        %729 = vmatprep.subr.mxu0 0.0
        %730 = vmatpush1.msra.mxu0 0.0
        %731 = vmatprep.subr.mxu0 0.0
        %732 = vmatpush1.msra.mxu0 0.0
        %733 = vmatprep.subr.mxu0 0.0
        %734 = vmatpush1.msra.mxu0 0.0
        %735 = vmatprep.mubr.f32.mxu0 0.0
        %736 = vmatmul.mubr.f32.gmra.mrb[0].mxu0 %v663
        %v737 = vpop.f32.mrb[0].mxu0
        %v738 = vadd.f32 0.0, %v737
        %v739 = vpop.f32.mrb[0].mxu0
        %740 = vmatprep.mubr.f32.mxu0 0.0
        %741 = vmatmul.mubr.f32.gmra.mrb[0].mxu0 %v665
        %v742 = vpop.f32.mrb[0].mxu0
        %v743 = vadd.f32 0.0, %v742
        %v744 = vpop.f32.mrb[0].mxu0
        %745 = vdwg.mxu0
        %v746 = vsel %vm585, %v648, 0
        %v748 = vsel %vm585, %v649, 0
        %v751 = vsel %vm667, %v651, 0
        %753 = vmatprep.subr.mxu0 0.0
        %754 = vmatpush1.msra.mxu0 %v751
        %755 = vmatprep.subr.mxu0 0.0
        %756 = vmatpush1.msra.mxu0 0.0
        %757 = vmatprep.subr.mxu0 0.0
        %758 = vmatpush1.msra.mxu0 0.0
        %759 = vmatprep.subr.mxu0 0.0
        %760 = vmatpush1.msra.mxu0 0.0
        %761 = vmatprep.subr.mxu0 0.0
        %762 = vmatpush1.msra.mxu0 0.0
        %763 = vmatprep.subr.mxu0 0.0
        %764 = vmatpush1.msra.mxu0 0.0
        %765 = vmatprep.subr.mxu0 0.0
        %766 = vmatpush1.msra.mxu0 0.0
        %767 = vmatprep.subr.mxu0 0.0
        %768 = vmatpush1.msra.mxu0 0.0
        %769 = vmatprep.subr.mxu0 0.0
        %770 = vmatpush1.msra.mxu0 0.0
        %771 = vmatprep.subr.mxu0 0.0
        %772 = vmatpush1.msra.mxu0 0.0
        %773 = vmatprep.subr.mxu0 0.0
        %774 = vmatpush1.msra.mxu0 0.0
        %775 = vmatprep.subr.mxu0 0.0
        %776 = vmatpush1.msra.mxu0 0.0
        %777 = vmatprep.subr.mxu0 0.0
        %778 = vmatpush1.msra.mxu0 0.0
        %779 = vmatprep.subr.mxu0 0.0
        %780 = vmatpush1.msra.mxu0 0.0
        %781 = vmatprep.subr.mxu0 0.0
        %782 = vmatpush1.msra.mxu0 0.0
        %783 = vmatprep.subr.mxu0 0.0
        %784 = vmatpush1.msra.mxu0 0.0
        %785 = vmatprep.subr.mxu0 0.0
        %786 = vmatpush1.msra.mxu0 0.0
        %787 = vmatprep.subr.mxu0 0.0
        %788 = vmatpush1.msra.mxu0 0.0
        %789 = vmatprep.subr.mxu0 0.0
        %790 = vmatpush1.msra.mxu0 0.0
        %791 = vmatprep.subr.mxu0 0.0
        %792 = vmatpush1.msra.mxu0 0.0
        %793 = vmatprep.subr.mxu0 0.0
        %794 = vmatpush1.msra.mxu0 0.0
        %795 = vmatprep.subr.mxu0 0.0
        %796 = vmatpush1.msra.mxu0 0.0
        %797 = vmatprep.subr.mxu0 0.0
        %798 = vmatpush1.msra.mxu0 0.0
        %799 = vmatprep.subr.mxu0 0.0
        %800 = vmatpush1.msra.mxu0 0.0
        %801 = vmatprep.subr.mxu0 0.0
        %802 = vmatpush1.msra.mxu0 0.0
        %803 = vmatprep.subr.mxu0 0.0
        %804 = vmatpush1.msra.mxu0 0.0
        %805 = vmatprep.subr.mxu0 0.0
        %806 = vmatpush1.msra.mxu0 0.0
        %807 = vmatprep.subr.mxu0 0.0
        %808 = vmatpush1.msra.mxu0 0.0
        %809 = vmatprep.subr.mxu0 0.0
        %810 = vmatpush1.msra.mxu0 0.0
        %811 = vmatprep.subr.mxu0 0.0
        %812 = vmatpush1.msra.mxu0 0.0
        %813 = vmatprep.subr.mxu0 0.0
        %814 = vmatpush1.msra.mxu0 0.0
        %815 = vmatprep.subr.mxu0 0.0
        %816 = vmatpush1.msra.mxu0 0.0
        %817 = vmatprep.mubr.f32.mxu0 0.0
        %818 = vmatmul.mubr.f32.gmra.mrb[0].mxu0 %v746
        %v819 = vpop.f32.mrb[0].mxu0
        %v820 = vadd.f32 %v738, %v819
        %v821 = vpop.f32.mrb[0].mxu0
        %822 = vmatprep.mubr.f32.mxu0 0.0
        %823 = vmatmul.mubr.f32.gmra.mrb[0].mxu0 %v748
        %v824 = vpop.f32.mrb[0].mxu0
        %v825 = vadd.f32 %v743, %v824
        %v826 = vpop.f32.mrb[0].mxu0
        %827 = vdwg.mxu0
        %s828 = scalar_lea.vmem %s5, 8
        %v829 = vld [vmem:[%s828] sm:$0xf]
        %vm830 = vcmask 1045504
        %v831 = vrot.slane %v648, 2
        %v832 = vrot.slane %v649, 2
        %v833 = vsel %vm830, %v831, %v832
        %v834 = vrot.slane %v650, 2
        %v835 = vsel %vm830, %v832, %v834
        %v836 = vsel %vm585, %v833, 0
        %v838 = vsel %vm585, %v835, 0
        %v841 = vsel %vm667, %v829, 0
        %843 = vmatprep.subr.mxu0 0.0
        %844 = vmatpush1.msra.mxu0 %v841
        %845 = vmatprep.subr.mxu0 0.0
        %846 = vmatpush1.msra.mxu0 0.0
        %847 = vmatprep.subr.mxu0 0.0
        %848 = vmatpush1.msra.mxu0 0.0
        %849 = vmatprep.subr.mxu0 0.0
        %850 = vmatpush1.msra.mxu0 0.0
        %851 = vmatprep.subr.mxu0 0.0
        %852 = vmatpush1.msra.mxu0 0.0
        %853 = vmatprep.subr.mxu0 0.0
        %854 = vmatpush1.msra.mxu0 0.0
        %855 = vmatprep.subr.mxu0 0.0
        %856 = vmatpush1.msra.mxu0 0.0
        %857 = vmatprep.subr.mxu0 0.0
        %858 = vmatpush1.msra.mxu0 0.0
        %859 = vmatprep.subr.mxu0 0.0
        %860 = vmatpush1.msra.mxu0 0.0
        %861 = vmatprep.subr.mxu0 0.0
        %862 = vmatpush1.msra.mxu0 0.0
        %863 = vmatprep.subr.mxu0 0.0
        %864 = vmatpush1.msra.mxu0 0.0
        %865 = vmatprep.subr.mxu0 0.0
        %866 = vmatpush1.msra.mxu0 0.0
        %867 = vmatprep.subr.mxu0 0.0
        %868 = vmatpush1.msra.mxu0 0.0
        %869 = vmatprep.subr.mxu0 0.0
        %870 = vmatpush1.msra.mxu0 0.0
        %871 = vmatprep.subr.mxu0 0.0
        %872 = vmatpush1.msra.mxu0 0.0
        %873 = vmatprep.subr.mxu0 0.0
        %874 = vmatpush1.msra.mxu0 0.0
        %875 = vmatprep.subr.mxu0 0.0
        %876 = vmatpush1.msra.mxu0 0.0
        %877 = vmatprep.subr.mxu0 0.0
        %878 = vmatpush1.msra.mxu0 0.0
        %879 = vmatprep.subr.mxu0 0.0
        %880 = vmatpush1.msra.mxu0 0.0
        %881 = vmatprep.subr.mxu0 0.0
        %882 = vmatpush1.msra.mxu0 0.0
        %883 = vmatprep.subr.mxu0 0.0
        %884 = vmatpush1.msra.mxu0 0.0
        %885 = vmatprep.subr.mxu0 0.0
        %886 = vmatpush1.msra.mxu0 0.0
        %887 = vmatprep.subr.mxu0 0.0
        %888 = vmatpush1.msra.mxu0 0.0
        %889 = vmatprep.subr.mxu0 0.0
        %890 = vmatpush1.msra.mxu0 0.0
        %891 = vmatprep.subr.mxu0 0.0
        %892 = vmatpush1.msra.mxu0 0.0
        %893 = vmatprep.subr.mxu0 0.0
        %894 = vmatpush1.msra.mxu0 0.0
        %895 = vmatprep.subr.mxu0 0.0
        %896 = vmatpush1.msra.mxu0 0.0
        %897 = vmatprep.subr.mxu0 0.0
        %898 = vmatpush1.msra.mxu0 0.0
        %899 = vmatprep.subr.mxu0 0.0
        %900 = vmatpush1.msra.mxu0 0.0
        %901 = vmatprep.subr.mxu0 0.0
        %902 = vmatpush1.msra.mxu0 0.0
        %903 = vmatprep.subr.mxu0 0.0
        %904 = vmatpush1.msra.mxu0 0.0
        %905 = vmatprep.subr.mxu0 0.0
        %906 = vmatpush1.msra.mxu0 0.0
        %907 = vmatprep.mubr.f32.mxu0 0.0
        %908 = vmatmul.mubr.f32.gmra.mrb[0].mxu0 %v836
        %v909 = vpop.f32.mrb[0].mxu0
        %v910 = vadd.f32 0.0, %v909
        %v911 = vpop.f32.mrb[0].mxu0
        %912 = vmatprep.mubr.f32.mxu0 0.0
        %913 = vmatmul.mubr.f32.gmra.mrb[0].mxu0 %v838
        %v914 = vpop.f32.mrb[0].mxu0
        %v915 = vadd.f32 0.0, %v914
        %v916 = vpop.f32.mrb[0].mxu0
        %917 = vdwg.mxu0
        %v918 = vadd.f32 %v820, %v910
        %v919 = vadd.f32 %v825, %v915
        %v920 = vld [vmem:[%s582] sm:$0xff]
        %v921 = vld [vmem:[%s582 + $0x8] sm:$0xff]
        %v922 = vld [vmem:[%s6] sm:$0xf]
        %v924 = vsel %vm585, %v920, 0
        %v927 = vsel %vm585, %v921, 0
        %v930 = vsel %vm667, %v922, 0
        %932 = vmatprep.subr.mxu0 0.0
        %933 = vmatpush1.msra.mxu0 %v930
        %934 = vmatprep.subr.mxu0 0.0
        %935 = vmatpush1.msra.mxu0 0.0
        %936 = vmatprep.subr.mxu0 0.0
        %937 = vmatpush1.msra.mxu0 0.0
        %938 = vmatprep.subr.mxu0 0.0
        %939 = vmatpush1.msra.mxu0 0.0
        %940 = vmatprep.subr.mxu0 0.0
        %941 = vmatpush1.msra.mxu0 0.0
        %942 = vmatprep.subr.mxu0 0.0
        %943 = vmatpush1.msra.mxu0 0.0
        %944 = vmatprep.subr.mxu0 0.0
        %945 = vmatpush1.msra.mxu0 0.0
        %946 = vmatprep.subr.mxu0 0.0
        %947 = vmatpush1.msra.mxu0 0.0
        %948 = vmatprep.subr.mxu0 0.0
        %949 = vmatpush1.msra.mxu0 0.0
        %950 = vmatprep.subr.mxu0 0.0
        %951 = vmatpush1.msra.mxu0 0.0
        %952 = vmatprep.subr.mxu0 0.0
        %953 = vmatpush1.msra.mxu0 0.0
        %954 = vmatprep.subr.mxu0 0.0
        %955 = vmatpush1.msra.mxu0 0.0
        %956 = vmatprep.subr.mxu0 0.0
        %957 = vmatpush1.msra.mxu0 0.0
        %958 = vmatprep.subr.mxu0 0.0
        %959 = vmatpush1.msra.mxu0 0.0
        %960 = vmatprep.subr.mxu0 0.0
        %961 = vmatpush1.msra.mxu0 0.0
        %962 = vmatprep.subr.mxu0 0.0
        %963 = vmatpush1.msra.mxu0 0.0
        %964 = vmatprep.subr.mxu0 0.0
        %965 = vmatpush1.msra.mxu0 0.0
        %966 = vmatprep.subr.mxu0 0.0
        %967 = vmatpush1.msra.mxu0 0.0
        %968 = vmatprep.subr.mxu0 0.0
        %969 = vmatpush1.msra.mxu0 0.0
        %970 = vmatprep.subr.mxu0 0.0
        %971 = vmatpush1.msra.mxu0 0.0
        %972 = vmatprep.subr.mxu0 0.0
        %973 = vmatpush1.msra.mxu0 0.0
        %974 = vmatprep.subr.mxu0 0.0
        %975 = vmatpush1.msra.mxu0 0.0
        %976 = vmatprep.subr.mxu0 0.0
        %977 = vmatpush1.msra.mxu0 0.0
        %978 = vmatprep.subr.mxu0 0.0
        %979 = vmatpush1.msra.mxu0 0.0
        %980 = vmatprep.subr.mxu0 0.0
        %981 = vmatpush1.msra.mxu0 0.0
        %982 = vmatprep.subr.mxu0 0.0
        %983 = vmatpush1.msra.mxu0 0.0
        %984 = vmatprep.subr.mxu0 0.0
        %985 = vmatpush1.msra.mxu0 0.0
        %986 = vmatprep.subr.mxu0 0.0
        %987 = vmatpush1.msra.mxu0 0.0
        %988 = vmatprep.subr.mxu0 0.0
        %989 = vmatpush1.msra.mxu0 0.0
        %990 = vmatprep.subr.mxu0 0.0
        %991 = vmatpush1.msra.mxu0 0.0
        %992 = vmatprep.subr.mxu0 0.0
        %993 = vmatpush1.msra.mxu0 0.0
        %994 = vmatprep.subr.mxu0 0.0
        %995 = vmatpush1.msra.mxu0 0.0
        %996 = vmatprep.mubr.f32.mxu0 0.0
        %997 = vmatmul.mubr.f32.gmra.mrb[0].mxu0 %v924
        %v998 = vpop.f32.mrb[0].mxu0
        %v999 = vadd.f32 0.0, %v998
        %v1000 = vpop.f32.mrb[0].mxu0
        %1001 = vmatprep.mubr.f32.mxu0 0.0
        %1002 = vmatmul.mubr.f32.gmra.mrb[0].mxu0 %v927
        %v1003 = vpop.f32.mrb[0].mxu0
        %v1004 = vadd.f32 0.0, %v1003
        %v1005 = vpop.f32.mrb[0].mxu0
        %1006 = vdwg.mxu0
        %v1007 = vadd.f32 %v918, %v999
        %v1008 = vadd.f32 %v919, %v1004
        %v1009 = vld [vmem:[%s2] sm:$0xff]
        %v1010 = vld [vmem:[%s2 + $0x8] sm:$0xff]
        %v1011 = vadd.f32 %v1007, %v1009
        %v1012 = vadd.f32 %v1008, %v1010
        %v1013 = vlaneseq
        %v1014 = vshrl.u32 %v1013, 7
        %v1015 = vsub.s32 0, %v1014
        %v1016 = vrot.slane %v1011, %v1015
        %vm1017 = vcmask 130048
        %1018 = vst.msk [vmem:[#allocation3] sm:$0xff] %vm1017, %v1016
        %vm1019 = vcmask 125952
        %1020 = vst.msk [vmem:[#allocation3 + $0x8] sm:$0xf] %vm1019, %v1016
        %1021 = vst.msk [vmem:[#allocation3 + $0xc] sm:$0xff] %vm1017, %v1011
        %1022 = vst.msk [vmem:[#allocation3 + $0x14] sm:$0xff] %vm1017, %v1012
        %v1023 = vlaneseq
        %v1024 = vshrl.u32 %v1023, 7
        %v1025 = vsub.s32 7, %v1024
        %v1026 = vrot.slane %v1012, %v1025
        %1027 = vst.msk [vmem:[#allocation3 + $0x1c] sm:$0xff] %vm1017, %v1026
        %1028 = vst.msk [vmem:[#allocation3 + $0x24] sm:$0xf] %vm1019, %v1026
        %v1029 = vld [vmem:[#allocation3] sm:$0xff]
        %v1030 = vld [vmem:[#allocation3 + $0x8] sm:$0xff]
        %v1031 = vld [vmem:[#allocation3 + $0x10] sm:$0xff]
        %v1032 = vld [vmem:[#allocation3 + $0x18] sm:$0xff]
        %v1033 = vld [vmem:[#allocation3 + $0x20] sm:$0xff]
        %v1034 = vadd.f32 %v1029, 0.0
        %v1035 = vadd.f32 %v1030, 0.0
        %v1039 = vrot.slane %v1029, 1
        %v1040 = vrot.slane %v1030, 1
        %v1041 = vsel %vm657, %v1039, %v1040
        %v1042 = vrot.slane %v1031, 1
        %v1043 = vsel %vm657, %v1040, %v1042
        %v1046 = vadd.f32 %v1034, %v1041
        %v1047 = vadd.f32 %v1035, %v1043
        %v1048 = vrot.slane %v1029, 2
        %v1049 = vrot.slane %v1030, 2
        %v1050 = vsel %vm830, %v1048, %v1049
        %v1051 = vrot.slane %v1031, 2
        %v1052 = vsel %vm830, %v1049, %v1051
        %v1055 = vadd.f32 %v1046, %v1050
        %v1056 = vadd.f32 %v1047, %v1052
        %vm1057 = vcmask 1044480
        %v1058 = vrot.slane %v1029, 3
        %v1059 = vrot.slane %v1030, 3
        %v1060 = vsel %vm1057, %v1058, %v1059
        %v1061 = vrot.slane %v1031, 3
        %v1062 = vsel %vm1057, %v1059, %v1061
        %v1065 = vadd.f32 %v1055, %v1060
        %v1066 = vadd.f32 %v1056, %v1062
        %v1067 = vrot.slane %v1029, 4
        %v1068 = vrot.slane %v1030, 4
        %v1069 = vsel %vm667, %v1067, %v1068
        %v1070 = vrot.slane %v1031, 4
        %v1071 = vsel %vm667, %v1068, %v1070
        %v1074 = vadd.f32 %v1065, %v1069
        %v1075 = vadd.f32 %v1066, %v1071
        %vm1076 = vcmask 1042432
        %v1077 = vrot.slane %v1029, 5
        %v1078 = vrot.slane %v1030, 5
        %v1079 = vsel %vm1076, %v1077, %v1078
        %v1080 = vrot.slane %v1031, 5
        %v1081 = vsel %vm1076, %v1078, %v1080
        %v1084 = vadd.f32 %v1074, %v1079
        %v1085 = vadd.f32 %v1075, %v1081
        %vm1086 = vcmask 1041408
        %v1087 = vrot.slane %v1029, 6
        %v1088 = vrot.slane %v1030, 6
        %v1089 = vsel %vm1086, %v1087, %v1088
        %v1090 = vrot.slane %v1031, 6
        %v1091 = vsel %vm1086, %v1088, %v1090
        %v1094 = vadd.f32 %v1084, %v1089
        %v1095 = vadd.f32 %v1085, %v1091
        %vm1096 = vcmask 1040384
        %v1097 = vrot.slane %v1029, 7
        %v1098 = vrot.slane %v1030, 7
        %v1099 = vsel %vm1096, %v1097, %v1098
        %v1100 = vrot.slane %v1031, 7
        %v1101 = vsel %vm1096, %v1098, %v1100
        %v1104 = vadd.f32 %v1094, %v1099
        %v1105 = vadd.f32 %v1095, %v1101
        %v1106 = vadd.f32 %v1104, %v1030
        %v1107 = vadd.f32 %v1105, %v1031
        %v1109 = vrot.slane %v1032, 1
        %v1110 = vsel %vm657, %v1042, %v1109
        %v1112 = vadd.f32 %v1106, %v1043
        %v1113 = vadd.f32 %v1107, %v1110
        %v1114 = vrot.slane %v1032, 2
        %v1115 = vsel %vm830, %v1051, %v1114
        %v1117 = vadd.f32 %v1112, %v1052
        %v1118 = vadd.f32 %v1113, %v1115
        %v1119 = vrot.slane %v1032, 3
        %v1120 = vsel %vm1057, %v1061, %v1119
        %v1122 = vadd.f32 %v1117, %v1062
        %v1123 = vadd.f32 %v1118, %v1120
        %v1124 = vrot.slane %v1032, 4
        %v1125 = vsel %vm667, %v1070, %v1124
        %v1127 = vadd.f32 %v1122, %v1071
        %v1128 = vadd.f32 %v1123, %v1125
        %v1129 = vrot.slane %v1032, 5
        %v1130 = vsel %vm1076, %v1080, %v1129
        %v1132 = vadd.f32 %v1127, %v1081
        %v1133 = vadd.f32 %v1128, %v1130
        %v1134 = vrot.slane %v1032, 6
        %v1135 = vsel %vm1086, %v1090, %v1134
        %v1137 = vadd.f32 %v1132, %v1091
        %v1138 = vadd.f32 %v1133, %v1135
        %v1139 = vrot.slane %v1032, 7
        %v1140 = vsel %vm1096, %v1100, %v1139
        %v1142 = vadd.f32 %v1137, %v1101
        %v1143 = vadd.f32 %v1138, %v1140
        %v1144 = vadd.f32 %v1142, %v1031
        %v1145 = vadd.f32 %v1143, %v1032
        %v1147 = vrot.slane %v1033, 1
        %v1148 = vsel %vm657, %v1109, %v1147
        %v1150 = vadd.f32 %v1144, %v1110
        %v1151 = vadd.f32 %v1145, %v1148
        %v1152 = vrot.slane %v1033, 2
        %v1153 = vsel %vm830, %v1114, %v1152
        %v1155 = vadd.f32 %v1150, %v1115
        %v1156 = vadd.f32 %v1151, %v1153
        %v1157 = vrot.slane %v1033, 3
        %v1158 = vsel %vm1057, %v1119, %v1157
        %v1160 = vadd.f32 %v1155, %v1120
        %v1161 = vadd.f32 %v1156, %v1158
        %v1162 = vrot.slane %v1033, 4
        %v1163 = vsel %vm667, %v1124, %v1162
        %v1165 = vadd.f32 %v1160, %v1125
        %v1166 = vadd.f32 %v1161, %v1163
        %v1167 = vrot.slane %v1033, 5
        %v1168 = vsel %vm1076, %v1129, %v1167
        %v1170 = vadd.f32 %v1165, %v1130
        %v1171 = vadd.f32 %v1166, %v1168
        %v1172 = vrot.slane %v1033, 6
        %v1173 = vsel %vm1086, %v1134, %v1172
        %v1175 = vadd.f32 %v1170, %v1135
        %v1176 = vadd.f32 %v1171, %v1173
        %v1177 = vrot.slane %v1033, 7
        %v1178 = vsel %vm1096, %v1139, %v1177
        %v1180 = vadd.f32 %v1175, %v1140
        %v1181 = vadd.f32 %v1176, %v1178
        %v1182 = vadd.f32 %v1180, %v1032
        %v1183 = vadd.f32 %v1181, %v1033
        %v1184 = vmul.f32 %v1182, 0.04
        %v1185 = vmul.f32 %v1183, 0.04
        %v1186 = vsub.f32 %v1011, %v1184
        %v1187 = vsub.f32 %v1012, %v1185
        %v1188 = vld [vmem:[%s7] sm:$0xff]
        %v1189 = vld [vmem:[%s7 + $0x8] sm:$0xff]
        %v1190 = vld [vmem:[%s8] sm:$0x1]
        %v1191 = vld [vmem:[%s9] sm:$0xff]
        %v1192 = vld [vmem:[%s9 + $0x8] sm:$0xff]
        %v1193 = vld [vmem:[%s9 + $0x10] sm:$0xff]
        %v1194 = vld [vmem:[%s9 + $0x18] sm:$0xff]
        %v1195 = vld [vmem:[%s10] sm:$0x1]
        %v1197 = vlaneseq
        %v1198 = vshrl.u32 %v1197, 7
        %v1199 = vsub.s32 0, %v1198
        %v1200 = vrot.slane %v1190, %v1199
        %v1203 = vsel %vm1017, %v1186, 0
        %v1206 = vsel %vm1017, %v1187, 0
        %1208 = vmatprep.subr.mxu0 0.0
        %1209 = vmatpush1.msra.mxu0 %v1188
        %1210 = vmatprep.subr.mxu0 0.0
        %1211 = vmatpush1.msra.mxu0 %v1189
        %1212 = vmatprep.subr.mxu0 0.0
        %1213 = vmatpush1.msra.mxu0 0.0
        %1214 = vmatprep.subr.mxu0 0.0
        %1215 = vmatpush1.msra.mxu0 0.0
        %1216 = vmatprep.subr.mxu0 0.0
        %1217 = vmatpush1.msra.mxu0 0.0
        %1218 = vmatprep.subr.mxu0 0.0
        %1219 = vmatpush1.msra.mxu0 0.0
        %1220 = vmatprep.subr.mxu0 0.0
        %1221 = vmatpush1.msra.mxu0 0.0
        %1222 = vmatprep.subr.mxu0 0.0
        %1223 = vmatpush1.msra.mxu0 0.0
        %1224 = vmatprep.subr.mxu0 0.0
        %1225 = vmatpush1.msra.mxu0 0.0
        %1226 = vmatprep.subr.mxu0 0.0
        %1227 = vmatpush1.msra.mxu0 0.0
        %1228 = vmatprep.subr.mxu0 0.0
        %1229 = vmatpush1.msra.mxu0 0.0
        %1230 = vmatprep.subr.mxu0 0.0
        %1231 = vmatpush1.msra.mxu0 0.0
        %1232 = vmatprep.subr.mxu0 0.0
        %1233 = vmatpush1.msra.mxu0 0.0
        %1234 = vmatprep.subr.mxu0 0.0
        %1235 = vmatpush1.msra.mxu0 0.0
        %1236 = vmatprep.subr.mxu0 0.0
        %1237 = vmatpush1.msra.mxu0 0.0
        %1238 = vmatprep.subr.mxu0 0.0
        %1239 = vmatpush1.msra.mxu0 0.0
        %1240 = vmatprep.subr.mxu0 0.0
        %1241 = vmatpush1.msra.mxu0 0.0
        %1242 = vmatprep.subr.mxu0 0.0
        %1243 = vmatpush1.msra.mxu0 0.0
        %1244 = vmatprep.subr.mxu0 0.0
        %1245 = vmatpush1.msra.mxu0 0.0
        %1246 = vmatprep.subr.mxu0 0.0
        %1247 = vmatpush1.msra.mxu0 0.0
        %1248 = vmatprep.subr.mxu0 0.0
        %1249 = vmatpush1.msra.mxu0 0.0
        %1250 = vmatprep.subr.mxu0 0.0
        %1251 = vmatpush1.msra.mxu0 0.0
        %1252 = vmatprep.subr.mxu0 0.0
        %1253 = vmatpush1.msra.mxu0 0.0
        %1254 = vmatprep.subr.mxu0 0.0
        %1255 = vmatpush1.msra.mxu0 0.0
        %1256 = vmatprep.subr.mxu0 0.0
        %1257 = vmatpush1.msra.mxu0 0.0
        %1258 = vmatprep.subr.mxu0 0.0
        %1259 = vmatpush1.msra.mxu0 0.0
        %1260 = vmatprep.subr.mxu0 0.0
        %1261 = vmatpush1.msra.mxu0 0.0
        %1262 = vmatprep.subr.mxu0 0.0
        %1263 = vmatpush1.msra.mxu0 0.0
        %1264 = vmatprep.subr.mxu0 0.0
        %1265 = vmatpush1.msra.mxu0 0.0
        %1266 = vmatprep.subr.mxu0 0.0
        %1267 = vmatpush1.msra.mxu0 0.0
        %1268 = vmatprep.subr.mxu0 0.0
        %1269 = vmatpush1.msra.mxu0 0.0
        %1270 = vmatprep.subr.mxu0 0.0
        %1271 = vmatpush1.msra.mxu0 0.0
        %1272 = vmatprep.mubr.f32.mxu0 0.0
        %1273 = vmatmul.mubr.f32.gmra.mrb[0].mxu0 %v1203
        %v1274 = vpop.f32.mrb[0].mxu0
        %v1275 = vadd.f32 %v1200, %v1274
        %v1276 = vpop.f32.mrb[0].mxu0
        %1277 = vmatprep.mubr.f32.mxu0 0.0
        %1278 = vmatmul.mubr.f32.gmra.mrb[0].mxu0 %v1206
        %v1279 = vpop.f32.mrb[0].mxu0
        %v1280 = vadd.f32 %v1200, %v1279
        %v1281 = vpop.f32.mrb[0].mxu0
        %1282 = vdwg.mxu0
        %v1283 = vmul.f32 %v1275, 0.70710677
        %v1284 = vmul.f32 %v1280, 0.70710677
        %vm1285 = vcmp.ge.f32.partialorder %v1283, 0.0
        %vm1286 = vcmp.ge.f32.partialorder %v1284, 0.0
        %v1287 = vsel %vm1285, 1.0, -1.0
        %v1288 = vsel %vm1286, 1.0, -1.0
        %v1289 = vand.u32 2147483647, %v1283
        %v1290 = vand.u32 2147483647, %v1284
        %v1291 = vmul.f32 %v1289, 0.3275911
        %v1292 = vmul.f32 %v1290, 0.3275911
        %v1293 = vadd.f32 %v1291, 1.0
        %v1294 = vadd.f32 %v1292, 1.0
        %v1295 = vrcp.pop %v1293
        %v1296 = vmul.f32 1.0, %v1295
        %v1297 = vrcp.pop %v1294
        %v1298 = vmul.f32 1.0, %v1297
        %v1299 = vmul.f32 %v1296, 1.0614054
        %v1300 = vmul.f32 %v1298, 1.0614054
        %v1301 = vadd.f32 %v1299, -1.4531521
        %v1302 = vadd.f32 %v1300, -1.4531521
        %v1303 = vmul.f32 %v1296, %v1301
        %v1304 = vmul.f32 %v1298, %v1302
        %v1305 = vadd.f32 %v1303, 1.4214138
        %v1306 = vadd.f32 %v1304, 1.4214138
        %v1307 = vmul.f32 %v1296, %v1305
        %v1308 = vmul.f32 %v1298, %v1306
        %v1309 = vadd.f32 %v1307, -0.28449672
        %v1310 = vadd.f32 %v1308, -0.28449672
        %v1311 = vmul.f32 %v1296, %v1309
        %v1312 = vmul.f32 %v1298, %v1310
        %v1313 = vadd.f32 %v1311, 0.2548296
        %v1314 = vadd.f32 %v1312, 0.2548296
        %v1315 = vmul.f32 %v1296, %v1313
        %v1316 = vmul.f32 %v1298, %v1314
        %v1317 = vsub.f32 0.0, %v1289
        %v1318 = vsub.f32 0.0, %v1290
        %v1319 = vmul.f32 %v1317, %v1289
        %v1320 = vmul.f32 %v1318, %v1290
        %v1321 = vmul.f32 %v1319, 1.442695
        %v1322 = vpow.pop %v1321
        %v1323 = vmul.f32 %v1320, 1.442695
        %v1324 = vpow.pop %v1323
        %v1325 = vmul.f32 %v1315, %v1322
        %v1326 = vmul.f32 %v1316, %v1324
        %v1327 = vsub.f32 1.0, %v1325
        %v1328 = vsub.f32 1.0, %v1326
        %v1329 = vmul.f32 %v1287, %v1327
        %v1330 = vmul.f32 %v1288, %v1328
        %v1331 = vmul.f32 %v1275, 0.5
        %v1332 = vmul.f32 %v1280, 0.5
        %v1333 = vadd.f32 %v1329, 1.0
        %v1334 = vadd.f32 %v1330, 1.0
        %v1335 = vmul.f32 %v1331, %v1333
        %v1336 = vmul.f32 %v1332, %v1334
        %v1338 = vlaneseq
        %v1339 = vshrl.u32 %v1338, 7
        %v1340 = vsub.s32 0, %v1339
        %v1341 = vrot.slane %v1195, %v1340
        %vm1343 = vcmask 261120
        %v1345 = vsel %vm1343, %v1335, 0
        %v1348 = vsel %vm1343, %v1336, 0
        %1350 = vmatprep.subr.mxu0 0.0
        %1351 = vmatpush1.msra.mxu0 %v1191
        %1352 = vmatprep.subr.mxu0 0.0
        %1353 = vmatpush1.msra.mxu0 %v1192
        %1354 = vmatprep.subr.mxu0 0.0
        %1355 = vmatpush1.msra.mxu0 %v1193
        %1356 = vmatprep.subr.mxu0 0.0
        %1357 = vmatpush1.msra.mxu0 %v1194
        %1358 = vmatprep.subr.mxu0 0.0
        %1359 = vmatpush1.msra.mxu0 0.0
        %1360 = vmatprep.subr.mxu0 0.0
        %1361 = vmatpush1.msra.mxu0 0.0
        %1362 = vmatprep.subr.mxu0 0.0
        %1363 = vmatpush1.msra.mxu0 0.0
        %1364 = vmatprep.subr.mxu0 0.0
        %1365 = vmatpush1.msra.mxu0 0.0
        %1366 = vmatprep.subr.mxu0 0.0
        %1367 = vmatpush1.msra.mxu0 0.0
        %1368 = vmatprep.subr.mxu0 0.0
        %1369 = vmatpush1.msra.mxu0 0.0
        %1370 = vmatprep.subr.mxu0 0.0
        %1371 = vmatpush1.msra.mxu0 0.0
        %1372 = vmatprep.subr.mxu0 0.0
        %1373 = vmatpush1.msra.mxu0 0.0
        %1374 = vmatprep.subr.mxu0 0.0
        %1375 = vmatpush1.msra.mxu0 0.0
        %1376 = vmatprep.subr.mxu0 0.0
        %1377 = vmatpush1.msra.mxu0 0.0
        %1378 = vmatprep.subr.mxu0 0.0
        %1379 = vmatpush1.msra.mxu0 0.0
        %1380 = vmatprep.subr.mxu0 0.0
        %1381 = vmatpush1.msra.mxu0 0.0
        %1382 = vmatprep.subr.mxu0 0.0
        %1383 = vmatpush1.msra.mxu0 0.0
        %1384 = vmatprep.subr.mxu0 0.0
        %1385 = vmatpush1.msra.mxu0 0.0
        %1386 = vmatprep.subr.mxu0 0.0
        %1387 = vmatpush1.msra.mxu0 0.0
        %1388 = vmatprep.subr.mxu0 0.0
        %1389 = vmatpush1.msra.mxu0 0.0
        %1390 = vmatprep.subr.mxu0 0.0
        %1391 = vmatpush1.msra.mxu0 0.0
        %1392 = vmatprep.subr.mxu0 0.0
        %1393 = vmatpush1.msra.mxu0 0.0
        %1394 = vmatprep.subr.mxu0 0.0
        %1395 = vmatpush1.msra.mxu0 0.0
        %1396 = vmatprep.subr.mxu0 0.0
        %1397 = vmatpush1.msra.mxu0 0.0
        %1398 = vmatprep.subr.mxu0 0.0
        %1399 = vmatpush1.msra.mxu0 0.0
        %1400 = vmatprep.subr.mxu0 0.0
        %1401 = vmatpush1.msra.mxu0 0.0
        %1402 = vmatprep.subr.mxu0 0.0
        %1403 = vmatpush1.msra.mxu0 0.0
        %1404 = vmatprep.subr.mxu0 0.0
        %1405 = vmatpush1.msra.mxu0 0.0
        %1406 = vmatprep.subr.mxu0 0.0
        %1407 = vmatpush1.msra.mxu0 0.0
        %1408 = vmatprep.subr.mxu0 0.0
        %1409 = vmatpush1.msra.mxu0 0.0
        %1410 = vmatprep.subr.mxu0 0.0
        %1411 = vmatpush1.msra.mxu0 0.0
        %1412 = vmatprep.subr.mxu0 0.0
        %1413 = vmatpush1.msra.mxu0 0.0
        %1414 = vmatprep.mubr.f32.mxu0 0.0
        %1415 = vmatmul.mubr.f32.gmra.mrb[0].mxu0 %v1345
        %v1416 = vpop.f32.mrb[0].mxu0
        %v1417 = vadd.f32 %v1341, %v1416
        %v1418 = vpop.f32.mrb[0].mxu0
        %1419 = vmatprep.mubr.f32.mxu0 0.0
        %1420 = vmatmul.mubr.f32.gmra.mrb[0].mxu0 %v1348
        %v1421 = vpop.f32.mrb[0].mxu0
        %v1422 = vadd.f32 %v1341, %v1421
        %v1423 = vpop.f32.mrb[0].mxu0
        %1424 = vdwg.mxu0
        %v1425 = vld [vmem:[%s11] sm:$0xff]
        %v1426 = vld [vmem:[%s11 + $0x8] sm:$0xff]
        %v1427 = vld [vmem:[%s12] sm:$0x1]
        %v1428 = vld [vmem:[%s13] sm:$0xff]
        %v1429 = vld [vmem:[%s13 + $0x8] sm:$0xff]
        %v1430 = vld [vmem:[%s13 + $0x10] sm:$0xff]
        %v1431 = vld [vmem:[%s13 + $0x18] sm:$0xff]
        %v1432 = vld [vmem:[%s14] sm:$0x1]
        %v1434 = vlaneseq
        %v1435 = vshrl.u32 %v1434, 7
        %v1436 = vsub.s32 0, %v1435
        %v1437 = vrot.slane %v1427, %v1436
        %v1440 = vsel %vm1017, %v1184, 0
        %v1443 = vsel %vm1017, %v1185, 0
        %1445 = vmatprep.subr.mxu0 0.0
        %1446 = vmatpush1.msra.mxu0 %v1425
        %1447 = vmatprep.subr.mxu0 0.0
        %1448 = vmatpush1.msra.mxu0 %v1426
        %1449 = vmatprep.subr.mxu0 0.0
        %1450 = vmatpush1.msra.mxu0 0.0
        %1451 = vmatprep.subr.mxu0 0.0
        %1452 = vmatpush1.msra.mxu0 0.0
        %1453 = vmatprep.subr.mxu0 0.0
        %1454 = vmatpush1.msra.mxu0 0.0
        %1455 = vmatprep.subr.mxu0 0.0
        %1456 = vmatpush1.msra.mxu0 0.0
        %1457 = vmatprep.subr.mxu0 0.0
        %1458 = vmatpush1.msra.mxu0 0.0
        %1459 = vmatprep.subr.mxu0 0.0
        %1460 = vmatpush1.msra.mxu0 0.0
        %1461 = vmatprep.subr.mxu0 0.0
        %1462 = vmatpush1.msra.mxu0 0.0
        %1463 = vmatprep.subr.mxu0 0.0
        %1464 = vmatpush1.msra.mxu0 0.0
        %1465 = vmatprep.subr.mxu0 0.0
        %1466 = vmatpush1.msra.mxu0 0.0
        %1467 = vmatprep.subr.mxu0 0.0
        %1468 = vmatpush1.msra.mxu0 0.0
        %1469 = vmatprep.subr.mxu0 0.0
        %1470 = vmatpush1.msra.mxu0 0.0
        %1471 = vmatprep.subr.mxu0 0.0
        %1472 = vmatpush1.msra.mxu0 0.0
        %1473 = vmatprep.subr.mxu0 0.0
        %1474 = vmatpush1.msra.mxu0 0.0
        %1475 = vmatprep.subr.mxu0 0.0
        %1476 = vmatpush1.msra.mxu0 0.0
        %1477 = vmatprep.subr.mxu0 0.0
        %1478 = vmatpush1.msra.mxu0 0.0
        %1479 = vmatprep.subr.mxu0 0.0
        %1480 = vmatpush1.msra.mxu0 0.0
        %1481 = vmatprep.subr.mxu0 0.0
        %1482 = vmatpush1.msra.mxu0 0.0
        %1483 = vmatprep.subr.mxu0 0.0
        %1484 = vmatpush1.msra.mxu0 0.0
        %1485 = vmatprep.subr.mxu0 0.0
        %1486 = vmatpush1.msra.mxu0 0.0
        %1487 = vmatprep.subr.mxu0 0.0
        %1488 = vmatpush1.msra.mxu0 0.0
        %1489 = vmatprep.subr.mxu0 0.0
        %1490 = vmatpush1.msra.mxu0 0.0
        %1491 = vmatprep.subr.mxu0 0.0
        %1492 = vmatpush1.msra.mxu0 0.0
        %1493 = vmatprep.subr.mxu0 0.0
        %1494 = vmatpush1.msra.mxu0 0.0
        %1495 = vmatprep.subr.mxu0 0.0
        %1496 = vmatpush1.msra.mxu0 0.0
        %1497 = vmatprep.subr.mxu0 0.0
        %1498 = vmatpush1.msra.mxu0 0.0
        %1499 = vmatprep.subr.mxu0 0.0
        %1500 = vmatpush1.msra.mxu0 0.0
        %1501 = vmatprep.subr.mxu0 0.0
        %1502 = vmatpush1.msra.mxu0 0.0
        %1503 = vmatprep.subr.mxu0 0.0
        %1504 = vmatpush1.msra.mxu0 0.0
        %1505 = vmatprep.subr.mxu0 0.0
        %1506 = vmatpush1.msra.mxu0 0.0
        %1507 = vmatprep.subr.mxu0 0.0
        %1508 = vmatpush1.msra.mxu0 0.0
        %1509 = vmatprep.mubr.f32.mxu0 0.0
        %1510 = vmatmul.mubr.f32.gmra.mrb[0].mxu0 %v1440
        %v1511 = vpop.f32.mrb[0].mxu0
        %v1512 = vadd.f32 %v1437, %v1511
        %v1513 = vpop.f32.mrb[0].mxu0
        %1514 = vmatprep.mubr.f32.mxu0 0.0
        %1515 = vmatmul.mubr.f32.gmra.mrb[0].mxu0 %v1443
        %v1516 = vpop.f32.mrb[0].mxu0
        %v1517 = vadd.f32 %v1437, %v1516
        %v1518 = vpop.f32.mrb[0].mxu0
        %1519 = vdwg.mxu0
        %v1520 = vmul.f32 %v1512, 0.70710677
        %v1521 = vmul.f32 %v1517, 0.70710677
        %vm1522 = vcmp.ge.f32.partialorder %v1520, 0.0
        %vm1523 = vcmp.ge.f32.partialorder %v1521, 0.0
        %v1524 = vsel %vm1522, 1.0, -1.0
        %v1525 = vsel %vm1523, 1.0, -1.0
        %v1526 = vand.u32 2147483647, %v1520
        %v1527 = vand.u32 2147483647, %v1521
        %v1528 = vmul.f32 %v1526, 0.3275911
        %v1529 = vmul.f32 %v1527, 0.3275911
        %v1530 = vadd.f32 %v1528, 1.0
        %v1531 = vadd.f32 %v1529, 1.0
        %v1532 = vrcp.pop %v1530
        %v1533 = vmul.f32 1.0, %v1532
        %v1534 = vrcp.pop %v1531
        %v1535 = vmul.f32 1.0, %v1534
        %v1536 = vmul.f32 %v1533, 1.0614054
        %v1537 = vmul.f32 %v1535, 1.0614054
        %v1538 = vadd.f32 %v1536, -1.4531521
        %v1539 = vadd.f32 %v1537, -1.4531521
        %v1540 = vmul.f32 %v1533, %v1538
        %v1541 = vmul.f32 %v1535, %v1539
        %v1542 = vadd.f32 %v1540, 1.4214138
        %v1543 = vadd.f32 %v1541, 1.4214138
        %v1544 = vmul.f32 %v1533, %v1542
        %v1545 = vmul.f32 %v1535, %v1543
        %v1546 = vadd.f32 %v1544, -0.28449672
        %v1547 = vadd.f32 %v1545, -0.28449672
        %v1548 = vmul.f32 %v1533, %v1546
        %v1549 = vmul.f32 %v1535, %v1547
        %v1550 = vadd.f32 %v1548, 0.2548296
        %v1551 = vadd.f32 %v1549, 0.2548296
        %v1552 = vmul.f32 %v1533, %v1550
        %v1553 = vmul.f32 %v1535, %v1551
        %v1554 = vsub.f32 0.0, %v1526
        %v1555 = vsub.f32 0.0, %v1527
        %v1556 = vmul.f32 %v1554, %v1526
        %v1557 = vmul.f32 %v1555, %v1527
        %v1558 = vmul.f32 %v1556, 1.442695
        %v1559 = vpow.pop %v1558
        %v1560 = vmul.f32 %v1557, 1.442695
        %v1561 = vpow.pop %v1560
        %v1562 = vmul.f32 %v1552, %v1559
        %v1563 = vmul.f32 %v1553, %v1561
        %v1564 = vsub.f32 1.0, %v1562
        %v1565 = vsub.f32 1.0, %v1563
        %v1566 = vmul.f32 %v1524, %v1564
        %v1567 = vmul.f32 %v1525, %v1565
        %v1568 = vmul.f32 %v1512, 0.5
        %v1569 = vmul.f32 %v1517, 0.5
        %v1570 = vadd.f32 %v1566, 1.0
        %v1571 = vadd.f32 %v1567, 1.0
        %v1572 = vmul.f32 %v1568, %v1570
        %v1573 = vmul.f32 %v1569, %v1571
        %v1575 = vlaneseq
        %v1576 = vshrl.u32 %v1575, 7
        %v1577 = vsub.s32 0, %v1576
        %v1578 = vrot.slane %v1432, %v1577
        %v1581 = vsel %vm1343, %v1572, 0
        %v1584 = vsel %vm1343, %v1573, 0
        %1586 = vmatprep.subr.mxu0 0.0
        %1587 = vmatpush1.msra.mxu0 %v1428
        %1588 = vmatprep.subr.mxu0 0.0
        %1589 = vmatpush1.msra.mxu0 %v1429
        %1590 = vmatprep.subr.mxu0 0.0
        %1591 = vmatpush1.msra.mxu0 %v1430
        %1592 = vmatprep.subr.mxu0 0.0
        %1593 = vmatpush1.msra.mxu0 %v1431
        %1594 = vmatprep.subr.mxu0 0.0
        %1595 = vmatpush1.msra.mxu0 0.0
        %1596 = vmatprep.subr.mxu0 0.0
        %1597 = vmatpush1.msra.mxu0 0.0
        %1598 = vmatprep.subr.mxu0 0.0
        %1599 = vmatpush1.msra.mxu0 0.0
        %1600 = vmatprep.subr.mxu0 0.0
        %1601 = vmatpush1.msra.mxu0 0.0
        %1602 = vmatprep.subr.mxu0 0.0
        %1603 = vmatpush1.msra.mxu0 0.0
        %1604 = vmatprep.subr.mxu0 0.0
        %1605 = vmatpush1.msra.mxu0 0.0
        %1606 = vmatprep.subr.mxu0 0.0
        %1607 = vmatpush1.msra.mxu0 0.0
        %1608 = vmatprep.subr.mxu0 0.0
        %1609 = vmatpush1.msra.mxu0 0.0
        %1610 = vmatprep.subr.mxu0 0.0
        %1611 = vmatpush1.msra.mxu0 0.0
        %1612 = vmatprep.subr.mxu0 0.0
        %1613 = vmatpush1.msra.mxu0 0.0
        %1614 = vmatprep.subr.mxu0 0.0
        %1615 = vmatpush1.msra.mxu0 0.0
        %1616 = vmatprep.subr.mxu0 0.0
        %1617 = vmatpush1.msra.mxu0 0.0
        %1618 = vmatprep.subr.mxu0 0.0
        %1619 = vmatpush1.msra.mxu0 0.0
        %1620 = vmatprep.subr.mxu0 0.0
        %1621 = vmatpush1.msra.mxu0 0.0
        %1622 = vmatprep.subr.mxu0 0.0
        %1623 = vmatpush1.msra.mxu0 0.0
        %1624 = vmatprep.subr.mxu0 0.0
        %1625 = vmatpush1.msra.mxu0 0.0
        %1626 = vmatprep.subr.mxu0 0.0
        %1627 = vmatpush1.msra.mxu0 0.0
        %1628 = vmatprep.subr.mxu0 0.0
        %1629 = vmatpush1.msra.mxu0 0.0
        %1630 = vmatprep.subr.mxu0 0.0
        %1631 = vmatpush1.msra.mxu0 0.0
        %1632 = vmatprep.subr.mxu0 0.0
        %1633 = vmatpush1.msra.mxu0 0.0
        %1634 = vmatprep.subr.mxu0 0.0
        %1635 = vmatpush1.msra.mxu0 0.0
        %1636 = vmatprep.subr.mxu0 0.0
        %1637 = vmatpush1.msra.mxu0 0.0
        %1638 = vmatprep.subr.mxu0 0.0
        %1639 = vmatpush1.msra.mxu0 0.0
        %1640 = vmatprep.subr.mxu0 0.0
        %1641 = vmatpush1.msra.mxu0 0.0
        %1642 = vmatprep.subr.mxu0 0.0
        %1643 = vmatpush1.msra.mxu0 0.0
        %1644 = vmatprep.subr.mxu0 0.0
        %1645 = vmatpush1.msra.mxu0 0.0
        %1646 = vmatprep.subr.mxu0 0.0
        %1647 = vmatpush1.msra.mxu0 0.0
        %1648 = vmatprep.subr.mxu0 0.0
        %1649 = vmatpush1.msra.mxu0 0.0
        %1650 = vmatprep.mubr.f32.mxu0 0.0
        %1651 = vmatmul.mubr.f32.gmra.mrb[0].mxu0 %v1581
        %v1652 = vpop.f32.mrb[0].mxu0
        %v1653 = vadd.f32 %v1578, %v1652
        %v1654 = vpop.f32.mrb[0].mxu0
        %1655 = vmatprep.mubr.f32.mxu0 0.0
        %1656 = vmatmul.mubr.f32.gmra.mrb[0].mxu0 %v1584
        %v1657 = vpop.f32.mrb[0].mxu0
        %v1658 = vadd.f32 %v1578, %v1657
        %v1659 = vpop.f32.mrb[0].mxu0
        %1660 = vdwg.mxu0
        %v1661 = vadd.f32 %v1417, %v1653
        %v1662 = vadd.f32 %v1422, %v1658
        %v1663 = vadd.f32 %v1661, %v1011
        %v1664 = vadd.f32 %v1662, %v1012
        %1665 = vst.msk [vmem:[%s560] sm:$0xff] %vm1017, %v1663
        %1666 = vst.msk [vmem:[%s560 + $0x8] sm:$0xff] %vm1017, %v1664
        %s1667 = sand.u32 %s368, 1
        %s1668 = scalar_lea.sflag [#allocation5], %s1667
        %s1669 = sand.u32 %s368, 1
        %s1670 = smul.addr %s1669, 16
        %s1671 = scalar_lea.vmem [#allocation4], %s1670
        %s1672 = sand.u32 %s35, 1
        %s1673 = scalar_lea.sflag [#allocation7], %s1672
        %s1674 = sand.u32 %s394, 1
        %s1675 = scalar_lea.vmem [#allocation6], %s1674
        %s1676 = sand.u32 %s35, 1
        %s1677 = scalar_lea.sflag [#allocation7], %s1676
        %s1678 = sand.u32 %s420, 1
        %s1679 = scalar_lea.vmem [#allocation8], %s1678
        // Predicated region
        $region81: #{stage1.1} parent=79 // pred_check
          %p1680 = pneg %p378
        $region82: #{stage1.1} parent=79 // pred_check_branch
          %1682 = sbr.rel (%p1680) target = $region84
        $region83: #{stage1.1} parent=79 // pred_region
          %s1684 = ssub.s32 256, 256
          %1685 = vsyncadd %s1668, %s1684
          %s1686 = smul.addr %s35, 2
          %s1687 = smul.addr %s1686, 128
          %s1688 = scalar_lea.hbm %s15, %s1687
          %s1689 = sshll.u32 %s1671, 4
          %s1690 = int_to_ptr.vmem [resolvable:$true] %s1689
          %1695 = dma.vmem_to_hbm [thread:$0]  %s1690, 256, %s1688, %s1668, 128, 128, 8
        $region84: #{stage1.1} parent=79 // pred_fallthru
          _
        // Predicated region
        $region85: #{stage1.1} parent=79 // pred_check
          %p1696 = pneg %p404
        $region86: #{stage1.1} parent=79 // pred_check_branch
          %1698 = sbr.rel (%p1696) target = $region88
        $region87: #{stage1.1} parent=79 // pred_region
          %s1700 = ssub.s32 16, 16
          %1701 = vsyncadd %s1673, %s1700
          %s1702 = smul.addr %s35, 16
          %s1703 = scalar_lea.hbm %s16, %s1702
          %s1705 = sshll.u32 %s1675, 4
          %s1706 = int_to_ptr.vmem [resolvable:$true] %s1705
          %1708 = dma.vmem_to_hbm [thread:$0]  %s1706, 16, %s1703, %s1673
        $region88: #{stage1.1} parent=79 // pred_fallthru
          _
        // Predicated region
        $region89: #{stage1.1} parent=79 // pred_check
          %p1709 = pneg %p430
        $region90: #{stage1.1} parent=79 // pred_check_branch
          %1711 = sbr.rel (%p1709) target = $region92
        $region91: #{stage1.1} parent=79 // pred_region
          %s1713 = ssub.s32 16, 16
          %1714 = vsyncadd %s1677, %s1713
          %s1715 = smul.addr %s35, 16
          %s1716 = scalar_lea.hbm %s17, %s1715
          %s1718 = sshll.u32 %s1679, 4
          %s1719 = int_to_ptr.vmem [resolvable:$true] %s1718
          %1721 = dma.vmem_to_hbm [thread:$0]  %s1719, 16, %s1716, %s1677
        $region92: #{stage1.1} parent=79 // pred_fallthru
          _
      $region80: #{stage1.1} parent=5 // pred_fallthru
        _
      %p1722 = scmp.le.s32.totalorder 2, %s30
      // Predicated region
      $region93: #{stage1.1} parent=5 // pred_check
        %p1723 = pneg %p1722
      $region94: #{stage1.1} parent=5 // pred_check_branch
        %1725 = sbr.rel (%p1723) target = $region96
      $region95: #{stage1.1} parent=5 // pred_region
        %s1726 = ssub.s32 %s30, 2
        // Predicated region
        $region97: #{stage1.1} parent=95 // pred_check
          %p1727 = pneg %p384
        $region98: #{stage1.1} parent=95 // pred_check_branch
          %1729 = sbr.rel (%p1727) target = $region100
        $region99: #{stage1.1} parent=95 // pred_region
          %s1730 = sand.u32 %s369, 1
          %s1731 = scalar_lea.sflag [#allocation5], %s1730
          %s1732 = sand.u32 %s369, 1
          %s1733 = smul.addr %s1732, 16
          %s1734 = scalar_lea.vmem [#allocation4], %s1733
          %1735 = dma.done %s1731, 256
        $region100: #{stage1.1} parent=95 // pred_fallthru
          _
        // Predicated region
        $region101: #{stage1.1} parent=95 // pred_check
          %p1736 = pneg %p410
        $region102: #{stage1.1} parent=95 // pred_check_branch
          %1738 = sbr.rel (%p1736) target = $region104
        $region103: #{stage1.1} parent=95 // pred_region
          %s1739 = sand.u32 %s36, 1
          %s1740 = scalar_lea.sflag [#allocation7], %s1739
          %s1741 = sand.u32 %s395, 1
          %s1742 = scalar_lea.vmem [#allocation6], %s1741
          %1743 = dma.done %s1740, 16
        $region104: #{stage1.1} parent=95 // pred_fallthru
          _
        // Predicated region
        $region105: #{stage1.1} parent=95 // pred_check
          %p1744 = pneg %p436
        $region106: #{stage1.1} parent=95 // pred_check_branch
          %1746 = sbr.rel (%p1744) target = $region108
        $region107: #{stage1.1} parent=95 // pred_region
          %s1747 = sand.u32 %s36, 1
          %s1748 = scalar_lea.sflag [#allocation7], %s1747
          %s1749 = sand.u32 %s421, 1
          %s1750 = scalar_lea.vmem [#allocation8], %s1749
          %1751 = dma.done %s1748, 16
        $region108: #{stage1.1} parent=95 // pred_fallthru
          _
      $region96: #{stage1.1} parent=5 // pred_fallthru
        _
    $region6: #{stage1.1} parent=1 // loop_footer
      %s34 = sadd.s32 1, %s30
    $region7: #{stage1.1} parent=1 // loop_footer_branch
      %29 = sbr.rel target = $region3
    $region8: #{stage1.1} parent=1 // loop_exit
      _
    %1752 = vsyncpa [#allocation5], 1
    %s1753 = scalar_lea.sflag [#allocation5], 1
    %1754 = vsyncpa %s1753, 1
    %1755 = vsyncpa [#allocation7], 1
    %s1756 = scalar_lea.sflag [#allocation7], 1
    %1757 = vsyncpa %s1756, 1

</llo_original>
